<compile_context>
chip_gen: v6e
topology: v6e:2x2x1
jax: 0.10.0
libtpu: 0.0.40
codegen_flags: <defaults>
</compile_context>

<pallas_src>
import jax
import jax.numpy as jnp
from jax.experimental import pallas as pl
from jax.experimental.pallas import tpu as pltpu

PIXELS = 16
DIMS = [32, 32, 64, 128, 256, PIXELS * PIXELS]  # in -> ... -> out (256)


def _round_up(x, m):
    return (x + m - 1) // m * m


def decoder_kernel(z_ref,
                   w1_ref, b1_ref,
                   w2_ref, b2_ref,
                   w3_ref, b3_ref,
                   w4_ref, b4_ref,
                   w5_ref, b5_ref,
                   out_ref):
    # Hidden layers: Linear + ReLU (f32 on the MXU/VPU).
    h = z_ref[...]
    for w_ref, b_ref in ((w1_ref, b1_ref), (w2_ref, b2_ref),
                         (w3_ref, b3_ref), (w4_ref, b4_ref)):
        h = jnp.dot(h, w_ref[...], preferred_element_type=jnp.float32) + b_ref[...]
        h = jnp.maximum(h, 0.0)

    # Final Linear (no ReLU).
    logits = jnp.dot(h, w5_ref[...], preferred_element_type=jnp.float32) + b5_ref[...]

    # log_softmax over dim=1 (feature axis), numerically stable.
    m = jnp.max(logits, axis=1, keepdims=True)
    shifted = logits - m
    lse = jnp.log(jnp.sum(jnp.exp(shifted), axis=1, keepdims=True))
    out_ref[...] = (shifted - lse).astype(out_ref.dtype)


def decoder_forward(z, params, *, tb=512):
    """z: [B, 32] f32; params: list of (W[in, out], b[1, out]) for 5 layers."""
    B = z.shape[0]
    in_dim, out_dim = DIMS[0], DIMS[-1]

    # Batch tile: multiple of 8 (f32 sublane), no larger than the padded batch.
    tb = max(8, _round_up(min(tb, B), 8))
    Bp = _round_up(B, tb)
    if Bp != B:
        z = jnp.pad(z, ((0, Bp - B), (0, 0)))  # padded rows computed, then dropped

    grid = (Bp // tb,)

    flat_inputs = [z]
    in_specs = [pl.BlockSpec((tb, in_dim), lambda i: (i, 0))]
    for (w, b) in params:
        flat_inputs.append(w)
        in_specs.append(pl.BlockSpec(w.shape, lambda i: (0, 0)))  # resident in VMEM
        flat_inputs.append(b)
        in_specs.append(pl.BlockSpec(b.shape, lambda i: (0, 0)))  # resident in VMEM

    # VMEM budget derived from actual buffers: resident weights/biases +
    # double-buffered z/out tiles + headroom for per-tile intermediates.
    weight_bytes = sum(w.size * w.dtype.itemsize + b.size * b.dtype.itemsize
                       for (w, b) in params)
    io_bytes = 2 * 2 * tb * (in_dim + out_dim) * 4   # 2x double buffer, f32
    vmem_bytes = int(weight_bytes + io_bytes + (8 << 20))

    out = pl.pallas_call(
        decoder_kernel,
        out_shape=jax.ShapeDtypeStruct((Bp, out_dim), jnp.float32),
        grid=grid,
        in_specs=in_specs,
        out_specs=pl.BlockSpec((tb, out_dim), lambda i: (i, 0)),
        compiler_params=pltpu.CompilerParams(
            dimension_semantics=("parallel",),
            vmem_limit_bytes=vmem_bytes),
    )(*flat_inputs)

    return out[:B] if Bp != B else out


def init_params(key):
    """Deterministic synthetic weights, PyTorch nn.Linear-like uniform init."""
    params = []
    for i in range(5):
        fan_in, fan_out = DIMS[i], DIMS[i + 1]
        key, kw, kb = jax.random.split(key, 3)
        bound = 1.0 / jnp.sqrt(fan_in)
        w = jax.random.uniform(kw, (fan_in, fan_out), jnp.float32, -bound, bound)
        b = jax.random.uniform(kb, (1, fan_out), jnp.float32, -bound, bound)
        params.append((w, b))
    return params


def reference_forward(z, params):
    h = z
    for (w, b) in params[:-1]:
        h = jnp.maximum(h @ w + b, 0.0)
    logits = h @ params[-1][0] + params[-1][1]
    return jax.nn.log_softmax(logits, axis=1)


if __name__ == "__main__":
    key = jax.random.PRNGKey(0)
    key, kz = jax.random.split(key)

    # Not a multiple of the tile on purpose: exercises the padded multi-step grid.
    batch = 300
    z = jax.random.normal(kz, (batch, DIMS[0]), jnp.float32)
    params = init_params(key)

    out = jax.block_until_ready(decoder_forward(z, params, tb=128))

    ref = reference_forward(z, params)
    assert out.shape == (batch, PIXELS * PIXELS)
    assert jnp.allclose(out, ref, atol=1e-4, rtol=1e-4), "mismatch vs reference"

    print("KERNEL_OK")
</pallas_src>

<mosaic_0001>
module attributes {stable_mosaic.version = 11 : i64} {
  func.func @decoder_kernel(%arg0: i32, %arg1: memref<128x32xf32, #tpu.memory_space<vmem>>, %arg2: memref<32x32xf32, #tpu.memory_space<vmem>>, %arg3: memref<1x32xf32, #tpu.memory_space<vmem>>, %arg4: memref<32x64xf32, #tpu.memory_space<vmem>>, %arg5: memref<1x64xf32, #tpu.memory_space<vmem>>, %arg6: memref<64x128xf32, #tpu.memory_space<vmem>>, %arg7: memref<1x128xf32, #tpu.memory_space<vmem>>, %arg8: memref<128x256xf32, #tpu.memory_space<vmem>>, %arg9: memref<1x256xf32, #tpu.memory_space<vmem>>, %arg10: memref<256x256xf32, #tpu.memory_space<vmem>>, %arg11: memref<1x256xf32, #tpu.memory_space<vmem>>, %arg12: memref<128x256xf32, #tpu.memory_space<vmem>>) attributes {dimension_semantics = [#tpu.dimension_semantics<parallel>], iteration_bounds = array<i64: 3>, scalar_prefetch = 0 : i64, scratch_operands = 0 : i64, tpu.core_type = #tpu.core_type<tc>, window_params = [{transform_indices = @transform_0, window_bounds = array<i64: 128, 32>}, {pipeline_mode = #tpu.pipeline_mode<synchronous>, transform_indices = @transform_1, window_bounds = array<i64: 32, 32>}, {pipeline_mode = #tpu.pipeline_mode<synchronous>, transform_indices = @transform_2, window_bounds = array<i64: 1, 32>}, {pipeline_mode = #tpu.pipeline_mode<synchronous>, transform_indices = @transform_3, window_bounds = array<i64: 32, 64>}, {pipeline_mode = #tpu.pipeline_mode<synchronous>, transform_indices = @transform_4, window_bounds = array<i64: 1, 64>}, {pipeline_mode = #tpu.pipeline_mode<synchronous>, transform_indices = @transform_5, window_bounds = array<i64: 64, 128>}, {pipeline_mode = #tpu.pipeline_mode<synchronous>, transform_indices = @transform_6, window_bounds = array<i64: 1, 128>}, {pipeline_mode = #tpu.pipeline_mode<synchronous>, transform_indices = @transform_7, window_bounds = array<i64: 128, 256>}, {pipeline_mode = #tpu.pipeline_mode<synchronous>, transform_indices = @transform_8, window_bounds = array<i64: 1, 256>}, {pipeline_mode = #tpu.pipeline_mode<synchronous>, transform_indices = @transform_9, window_bounds = array<i64: 256, 256>}, {pipeline_mode = #tpu.pipeline_mode<synchronous>, transform_indices = @transform_10, window_bounds = array<i64: 1, 256>}, {transform_indices = @transform_11, window_bounds = array<i64: 128, 256>}]} {
    %c0 = arith.constant 0 : index
    %c0_0 = arith.constant 0 : index
    %0 = vector.load %arg1[%c0, %c0_0] : memref<128x32xf32, #tpu.memory_space<vmem>>, vector<128x32xf32>
    %c0_1 = arith.constant 0 : index
    %c0_2 = arith.constant 0 : index
    %1 = vector.load %arg2[%c0_1, %c0_2] : memref<32x32xf32, #tpu.memory_space<vmem>>, vector<32x32xf32>
    %cst = arith.constant dense<0.000000e+00> : vector<128x32xf32>
    %2 = tpu.matmul %0, %1, %cst {dimension_numbers = #tpu.dot_dimension_numbers<[1], [0], [0], [1], [0, 0, 1, 1], [], []>} : vector<128x32xf32>, vector<32x32xf32>, vector<128x32xf32> -> vector<128x32xf32>
    %c0_3 = arith.constant 0 : index
    %c0_4 = arith.constant 0 : index
    %3 = vector.load %arg3[%c0_3, %c0_4] : memref<1x32xf32, #tpu.memory_space<vmem>>, vector<1x32xf32>
    %4 = vector.broadcast %3 : vector<1x32xf32> to vector<128x32xf32>
    %5 = arith.addf %2, %4 : vector<128x32xf32>
    %cst_5 = arith.constant 0.000000e+00 : f32
    %6 = vector.broadcast %cst_5 : f32 to vector<128x32xf32>
    %7 = arith.maximumf %5, %6 : vector<128x32xf32>
    %c0_6 = arith.constant 0 : index
    %c0_7 = arith.constant 0 : index
    %8 = vector.load %arg4[%c0_6, %c0_7] : memref<32x64xf32, #tpu.memory_space<vmem>>, vector<32x64xf32>
    %cst_8 = arith.constant dense<0.000000e+00> : vector<128x64xf32>
    %9 = tpu.matmul %7, %8, %cst_8 {dimension_numbers = #tpu.dot_dimension_numbers<[1], [0], [0], [1], [0, 0, 1, 1], [], []>} : vector<128x32xf32>, vector<32x64xf32>, vector<128x64xf32> -> vector<128x64xf32>
    %c0_9 = arith.constant 0 : index
    %c0_10 = arith.constant 0 : index
    %10 = vector.load %arg5[%c0_9, %c0_10] : memref<1x64xf32, #tpu.memory_space<vmem>>, vector<1x64xf32>
    %11 = vector.broadcast %10 : vector<1x64xf32> to vector<128x64xf32>
    %12 = arith.addf %9, %11 : vector<128x64xf32>
    %cst_11 = arith.constant 0.000000e+00 : f32
    %13 = vector.broadcast %cst_11 : f32 to vector<128x64xf32>
    %14 = arith.maximumf %12, %13 : vector<128x64xf32>
    %c0_12 = arith.constant 0 : index
    %c0_13 = arith.constant 0 : index
    %15 = vector.load %arg6[%c0_12, %c0_13] : memref<64x128xf32, #tpu.memory_space<vmem>>, vector<64x128xf32>
    %cst_14 = arith.constant dense<0.000000e+00> : vector<128x128xf32>
    %16 = tpu.matmul %14, %15, %cst_14 {dimension_numbers = #tpu.dot_dimension_numbers<[1], [0], [0], [1], [0, 0, 1, 1], [], []>} : vector<128x64xf32>, vector<64x128xf32>, vector<128x128xf32> -> vector<128x128xf32>
    %c0_15 = arith.constant 0 : index
    %c0_16 = arith.constant 0 : index
    %17 = vector.load %arg7[%c0_15, %c0_16] : memref<1x128xf32, #tpu.memory_space<vmem>>, vector<1x128xf32>
    %18 = vector.broadcast %17 : vector<1x128xf32> to vector<128x128xf32>
    %19 = arith.addf %16, %18 : vector<128x128xf32>
    %cst_17 = arith.constant 0.000000e+00 : f32
    %20 = vector.broadcast %cst_17 : f32 to vector<128x128xf32>
    %21 = arith.maximumf %19, %20 : vector<128x128xf32>
    %c0_18 = arith.constant 0 : index
    %c0_19 = arith.constant 0 : index
    %22 = vector.load %arg8[%c0_18, %c0_19] : memref<128x256xf32, #tpu.memory_space<vmem>>, vector<128x256xf32>
    %cst_20 = arith.constant dense<0.000000e+00> : vector<128x256xf32>
    %23 = tpu.matmul %21, %22, %cst_20 {dimension_numbers = #tpu.dot_dimension_numbers<[1], [0], [0], [1], [0, 0, 1, 1], [], []>} : vector<128x128xf32>, vector<128x256xf32>, vector<128x256xf32> -> vector<128x256xf32>
    %c0_21 = arith.constant 0 : index
    %c0_22 = arith.constant 0 : index
    %24 = vector.load %arg9[%c0_21, %c0_22] : memref<1x256xf32, #tpu.memory_space<vmem>>, vector<1x256xf32>
    %25 = vector.broadcast %24 : vector<1x256xf32> to vector<128x256xf32>
    %26 = arith.addf %23, %25 : vector<128x256xf32>
    %cst_23 = arith.constant 0.000000e+00 : f32
    %27 = vector.broadcast %cst_23 : f32 to vector<128x256xf32>
    %28 = arith.maximumf %26, %27 : vector<128x256xf32>
    %c0_24 = arith.constant 0 : index
    %c0_25 = arith.constant 0 : index
    %29 = vector.load %arg10[%c0_24, %c0_25] : memref<256x256xf32, #tpu.memory_space<vmem>>, vector<256x256xf32>
    %cst_26 = arith.constant dense<0.000000e+00> : vector<128x256xf32>
    %30 = tpu.matmul %28, %29, %cst_26 {dimension_numbers = #tpu.dot_dimension_numbers<[1], [0], [0], [1], [0, 0, 1, 1], [], []>} : vector<128x256xf32>, vector<256x256xf32>, vector<128x256xf32> -> vector<128x256xf32>
    %c0_27 = arith.constant 0 : index
    %c0_28 = arith.constant 0 : index
    %31 = vector.load %arg11[%c0_27, %c0_28] : memref<1x256xf32, #tpu.memory_space<vmem>>, vector<1x256xf32>
    %32 = vector.broadcast %31 : vector<1x256xf32> to vector<128x256xf32>
    %33 = arith.addf %30, %32 : vector<128x256xf32>
    %cst_29 = arith.constant dense<0xFF800000> : vector<128xf32>
    %34 = vector.multi_reduction <maximumf>, %33, %cst_29 [1] : vector<128x256xf32> to vector<128xf32>
    %35 = vector.shape_cast %34 : vector<128xf32> to vector<128x1xf32>
    %36 = vector.broadcast %35 : vector<128x1xf32> to vector<128x256xf32>
    %37 = arith.subf %33, %36 : vector<128x256xf32>
    %38 = math.exp %37 : vector<128x256xf32>
    %cst_30 = arith.constant dense<0.000000e+00> : vector<128xf32>
    %39 = vector.multi_reduction <add>, %38, %cst_30 [1] : vector<128x256xf32> to vector<128xf32>
    %40 = vector.shape_cast %39 : vector<128xf32> to vector<128x1xf32>
    %41 = math.log %40 : vector<128x1xf32>
    %42 = vector.broadcast %41 : vector<128x1xf32> to vector<128x256xf32>
    %43 = arith.subf %37, %42 : vector<128x256xf32>
    %c0_31 = arith.constant 0 : index
    %c0_32 = arith.constant 0 : index
    %44 = vector.load %arg12[%c0_31, %c0_32] : memref<128x256xf32, #tpu.memory_space<vmem>>, vector<128x256xf32>
    tpu.vector_store %arg12[%c0_31, %c0_32], %43 {strides = array<i32>} : memref<128x256xf32, #tpu.memory_space<vmem>>, vector<128x256xf32>,
    return
  }
  func.func @transform_0(%arg0: i32) -> (i32, i32) {
    %c0_i32 = arith.constant 0 : i32
    %c0_i32_0 = arith.constant 0 : i32
    return %arg0, %c0_i32 : i32, i32
  }
  func.func @transform_1(%arg0: i32) -> (i32, i32) {
    %c0_i32 = arith.constant 0 : i32
    %c0_i32_0 = arith.constant 0 : i32
    %c0_i32_1 = arith.constant 0 : i32
    return %c0_i32, %c0_i32_0 : i32, i32
  }
  func.func @transform_2(%arg0: i32) -> (i32, i32) {
    %c0_i32 = arith.constant 0 : i32
    %c0_i32_0 = arith.constant 0 : i32
    %c0_i32_1 = arith.constant 0 : i32
    return %c0_i32, %c0_i32_0 : i32, i32
  }
  func.func @transform_3(%arg0: i32) -> (i32, i32) {
    %c0_i32 = arith.constant 0 : i32
    %c0_i32_0 = arith.constant 0 : i32
    %c0_i32_1 = arith.constant 0 : i32
    return %c0_i32, %c0_i32_0 : i32, i32
  }
  func.func @transform_4(%arg0: i32) -> (i32, i32) {
    %c0_i32 = arith.constant 0 : i32
    %c0_i32_0 = arith.constant 0 : i32
    %c0_i32_1 = arith.constant 0 : i32
    return %c0_i32, %c0_i32_0 : i32, i32
  }
  func.func @transform_5(%arg0: i32) -> (i32, i32) {
    %c0_i32 = arith.constant 0 : i32
    %c0_i32_0 = arith.constant 0 : i32
    %c0_i32_1 = arith.constant 0 : i32
    return %c0_i32, %c0_i32_0 : i32, i32
  }
  func.func @transform_6(%arg0: i32) -> (i32, i32) {
    %c0_i32 = arith.constant 0 : i32
    %c0_i32_0 = arith.constant 0 : i32
    %c0_i32_1 = arith.constant 0 : i32
    return %c0_i32, %c0_i32_0 : i32, i32
  }
  func.func @transform_7(%arg0: i32) -> (i32, i32) {
    %c0_i32 = arith.constant 0 : i32
    %c0_i32_0 = arith.constant 0 : i32
    %c0_i32_1 = arith.constant 0 : i32
    return %c0_i32, %c0_i32_0 : i32, i32
  }
  func.func @transform_8(%arg0: i32) -> (i32, i32) {
    %c0_i32 = arith.constant 0 : i32
    %c0_i32_0 = arith.constant 0 : i32
    %c0_i32_1 = arith.constant 0 : i32
    return %c0_i32, %c0_i32_0 : i32, i32
  }
  func.func @transform_9(%arg0: i32) -> (i32, i32) {
    %c0_i32 = arith.constant 0 : i32
    %c0_i32_0 = arith.constant 0 : i32
    %c0_i32_1 = arith.constant 0 : i32
    return %c0_i32, %c0_i32_0 : i32, i32
  }
  func.func @transform_10(%arg0: i32) -> (i32, i32) {
    %c0_i32 = arith.constant 0 : i32
    %c0_i32_0 = arith.constant 0 : i32
    %c0_i32_1 = arith.constant 0 : i32
    return %c0_i32, %c0_i32_0 : i32, i32
  }
  func.func @transform_11(%arg0: i32) -> (i32, i32) {
    %c0_i32 = arith.constant 0 : i32
    %c0_i32_0 = arith.constant 0 : i32
    return %arg0, %c0_i32 : i32, i32
  }
}

</mosaic_0001>

<llo_original>
// kernel: tpu_custom_call.1
$region0: #{tpu_custom_call.1}
  #allocation0 [shape = 'u32[]', space=smem, size = 0x4, offset = 0x4, fixed_abs, tag = 'smem constant byte address 0x4 - core index']
  #allocation1 [shape = 'u32[144,128]{1,0:T(1,128)}', space=vmem, size = 0x12000, scoped, tag = 'internal scratch']
  %s0 = inlined_call_operand.vmem [shape: f32[384,32], index: 0, kind: input, shape index: {}]
  %s1 = inlined_call_operand.vmem [shape: f32[32,32], index: 1, kind: input, shape index: {}]
  %s2 = inlined_call_operand.vmem [shape: f32[1,32], index: 2, kind: input, shape index: {}]
  %s3 = inlined_call_operand.vmem [shape: f32[32,64], index: 3, kind: input, shape index: {}]
  %s4 = inlined_call_operand.vmem [shape: f32[1,64], index: 4, kind: input, shape index: {}]
  %s5 = inlined_call_operand.vmem [shape: f32[64,128], index: 5, kind: input, shape index: {}]
  %s6 = inlined_call_operand.vmem [shape: f32[1,128], index: 6, kind: input, shape index: {}]
  %s7 = inlined_call_operand.vmem [shape: f32[128,256], index: 7, kind: input, shape index: {}]
  %s8 = inlined_call_operand.vmem [shape: f32[1,256], index: 8, kind: input, shape index: {}]
  %s9 = inlined_call_operand.hbm [shape: f32[256,256], index: 9, kind: input, shape index: {}]
  %s10 = inlined_call_operand.vmem [shape: f32[1,256], index: 10, kind: input, shape index: {}]
  %s11 = inlined_call_operand.hbm [shape: f32[384,256], index: 11, kind: output, shape index: {}]
  %s12 = sld [smem:[#allocation0]]
  $region81: #{tpu_custom_call.1} parent=0
    _
  %s14 = ssub.s32 1, %s12
  %s15 = scalar_select 0, %s14, %s12
  $region1: #{tpu_custom_call.1} parent=0
    #allocation2 [shape = 'u8[262144]{0}', space=vmem, size = 0x40000, scoped, tag = 'input window, operand 9, single buffered']
    #allocation3 [shape = 's32[2]{0}', space=sflag, size = 0x8, scoped, tag = 'scoped memory for tpu_custom_call.1']
    #allocation4 [shape = 's32[2]{0}', space=sflag, size = 0x8, scoped, tag = 'scoped memory for tpu_custom_call.1']
    #allocation5 [shape = 'u8[262144]{0}', space=vmem, size = 0x40000, scoped, tag = 'output window, operand 0']
    %16 = vsyncpa [#allocation3], 0
    %17 = vsyncpa [#allocation4], 0
    %s18 = scalar_lea.sflag [#allocation4], 1
    %19 = vsyncpa %s18, 0
    loop: start=0, step=1, limit=5
    $region2: #{tpu_custom_call.1} parent=1 // loop_pre_header
      _
    $region3: #{tpu_custom_call.1} parent=1 // loop_header
      %s21 = sphi 0, %s25
      %p22 = scmp.ge.s32.totalorder %s21, 5
      %s31 = sphi 0, %s33
      %s34 = sphi 0, %s31
      %s35 = sphi 0, %s34
      %s51 = sphi 0, %s35
      %s55 = sphi 0, %s55
      %s57 = sphi 0, %s55
      %s58 = sphi 0, %s57
      %s72 = sphi 0, %s58
      %s76 = sphi 0, %s76
      %s78 = sphi 0, %s76
      %s79 = sphi 0, %s78
      %s93 = sphi 0, %s79
      %s97 = sphi 0, %s97
      %s99 = sphi 0, %s97
      %s100 = sphi 0, %s99
      %s114 = sphi 0, %s100
      %s118 = sphi 0, %s118
      %s120 = sphi 0, %s118
      %s121 = sphi 0, %s120
      %s135 = sphi 0, %s121
      %s139 = sphi 0, %s139
      %s141 = sphi 0, %s139
      %s142 = sphi 0, %s141
      %s156 = sphi 0, %s142
      %s160 = sphi 0, %s160
      %s162 = sphi 0, %s160
      %s163 = sphi 0, %s162
      %s177 = sphi 0, %s163
      %s181 = sphi 0, %s181
      %s183 = sphi 0, %s181
      %s184 = sphi 0, %s183
      %s198 = sphi 0, %s184
      %s202 = sphi 0, %s202
      %s204 = sphi 0, %s202
      %s205 = sphi 0, %s204
      %s219 = sphi 0, %s205
      %s223 = sphi 0, %s223
      %s225 = sphi 0, %s223
      %s226 = sphi 0, %s225
      %s240 = sphi 0, %s226
      %s244 = sphi 0, %s244
      %s246 = sphi 0, %s244
      %s247 = sphi 0, %s246
      %s261 = sphi 0, %s247
      %s267 = sphi 0, %s269
      %s270 = sphi 0, %s267
      %s271 = sphi 0, %s270
      %s287 = sphi 0, %s271
    $region4: #{tpu_custom_call.1} parent=1 // loop_header_branch
      %24 = sbr.rel (%p22) target = $region8
    $region5: #{tpu_custom_call.1} parent=1 // loop_body
      %s26 = ssub.s32 %s21, 1
      %s27 = ssub.s32 %s21, 2
      %s28 = sadd.s32 %s21, 1
      %s29 = ssub.s32 %s21, %s28
      %p30 = scmp.eq.s32.totalorder %s29, 0
      %s32 = sadd.s32 %s31, 1
      %s33 = scalar_select %p30, %s31, %s32
      %p36 = pneg %p30
      %p37 = scmp.eq.s32.totalorder %s21, 2
      %p38 = por %p36, %p37
      %p39 = scmp.ne.s32.totalorder %s31, %s34
      %p40 = scmp.eq.s32.totalorder %s21, 0
      %p41 = por %p39, %p40
      %p42 = scmp.ne.s32.totalorder %s31, %s34
      %p43 = scmp.eq.s32.totalorder %s26, 2
      %p44 = por %p42, %p43
      %p45 = scmp.ne.s32.totalorder %s34, %s35
      %p46 = scmp.eq.s32.totalorder %s26, 0
      %p47 = por %p45, %p46
      %p48 = scmp.ne.s32.totalorder %s34, %s35
      %p49 = scmp.eq.s32.totalorder %s27, 2
      %p50 = por %p48, %p49
      %p52 = scmp.ne.s32.totalorder %s35, %s51
      %p53 = scmp.eq.s32.totalorder %s27, 0
      %p54 = por %p52, %p53
      %s56 = sadd.s32 %s55, 1
      %p59 = scmp.eq.s32.totalorder %s21, 2
      %p60 = scmp.ne.s32.totalorder %s55, %s57
      %p61 = scmp.eq.s32.totalorder %s21, 0
      %p62 = por %p60, %p61
      %p63 = scmp.ne.s32.totalorder %s55, %s57
      %p64 = scmp.eq.s32.totalorder %s26, 2
      %p65 = por %p63, %p64
      %p66 = scmp.ne.s32.totalorder %s57, %s58
      %p67 = scmp.eq.s32.totalorder %s26, 0
      %p68 = por %p66, %p67
      %p69 = scmp.ne.s32.totalorder %s57, %s58
      %p70 = scmp.eq.s32.totalorder %s27, 2
      %p71 = por %p69, %p70
      %p73 = scmp.ne.s32.totalorder %s58, %s72
      %p74 = scmp.eq.s32.totalorder %s27, 0
      %p75 = por %p73, %p74
      %s77 = sadd.s32 %s76, 1
      %p80 = scmp.eq.s32.totalorder %s21, 2
      %p81 = scmp.ne.s32.totalorder %s76, %s78
      %p82 = scmp.eq.s32.totalorder %s21, 0
      %p83 = por %p81, %p82
      %p84 = scmp.ne.s32.totalorder %s76, %s78
      %p85 = scmp.eq.s32.totalorder %s26, 2
      %p86 = por %p84, %p85
      %p87 = scmp.ne.s32.totalorder %s78, %s79
      %p88 = scmp.eq.s32.totalorder %s26, 0
      %p89 = por %p87, %p88
      %p90 = scmp.ne.s32.totalorder %s78, %s79
      %p91 = scmp.eq.s32.totalorder %s27, 2
      %p92 = por %p90, %p91
      %p94 = scmp.ne.s32.totalorder %s79, %s93
      %p95 = scmp.eq.s32.totalorder %s27, 0
      %p96 = por %p94, %p95
      %s98 = sadd.s32 %s97, 1
      %p101 = scmp.eq.s32.totalorder %s21, 2
      %p102 = scmp.ne.s32.totalorder %s97, %s99
      %p103 = scmp.eq.s32.totalorder %s21, 0
      %p104 = por %p102, %p103
      %p105 = scmp.ne.s32.totalorder %s97, %s99
      %p106 = scmp.eq.s32.totalorder %s26, 2
      %p107 = por %p105, %p106
      %p108 = scmp.ne.s32.totalorder %s99, %s100
      %p109 = scmp.eq.s32.totalorder %s26, 0
      %p110 = por %p108, %p109
      %p111 = scmp.ne.s32.totalorder %s99, %s100
      %p112 = scmp.eq.s32.totalorder %s27, 2
      %p113 = por %p111, %p112
      %p115 = scmp.ne.s32.totalorder %s100, %s114
      %p116 = scmp.eq.s32.totalorder %s27, 0
      %p117 = por %p115, %p116
      %s119 = sadd.s32 %s118, 1
      %p122 = scmp.eq.s32.totalorder %s21, 2
      %p123 = scmp.ne.s32.totalorder %s118, %s120
      %p124 = scmp.eq.s32.totalorder %s21, 0
      %p125 = por %p123, %p124
      %p126 = scmp.ne.s32.totalorder %s118, %s120
      %p127 = scmp.eq.s32.totalorder %s26, 2
      %p128 = por %p126, %p127
      %p129 = scmp.ne.s32.totalorder %s120, %s121
      %p130 = scmp.eq.s32.totalorder %s26, 0
      %p131 = por %p129, %p130
      %p132 = scmp.ne.s32.totalorder %s120, %s121
      %p133 = scmp.eq.s32.totalorder %s27, 2
      %p134 = por %p132, %p133
      %p136 = scmp.ne.s32.totalorder %s121, %s135
      %p137 = scmp.eq.s32.totalorder %s27, 0
      %p138 = por %p136, %p137
      %s140 = sadd.s32 %s139, 1
      %p143 = scmp.eq.s32.totalorder %s21, 2
      %p144 = scmp.ne.s32.totalorder %s139, %s141
      %p145 = scmp.eq.s32.totalorder %s21, 0
      %p146 = por %p144, %p145
      %p147 = scmp.ne.s32.totalorder %s139, %s141
      %p148 = scmp.eq.s32.totalorder %s26, 2
      %p149 = por %p147, %p148
      %p150 = scmp.ne.s32.totalorder %s141, %s142
      %p151 = scmp.eq.s32.totalorder %s26, 0
      %p152 = por %p150, %p151
      %p153 = scmp.ne.s32.totalorder %s141, %s142
      %p154 = scmp.eq.s32.totalorder %s27, 2
      %p155 = por %p153, %p154
      %p157 = scmp.ne.s32.totalorder %s142, %s156
      %p158 = scmp.eq.s32.totalorder %s27, 0
      %p159 = por %p157, %p158
      %s161 = sadd.s32 %s160, 1
      %p164 = scmp.eq.s32.totalorder %s21, 2
      %p165 = scmp.ne.s32.totalorder %s160, %s162
      %p166 = scmp.eq.s32.totalorder %s21, 0
      %p167 = por %p165, %p166
      %p168 = scmp.ne.s32.totalorder %s160, %s162
      %p169 = scmp.eq.s32.totalorder %s26, 2
      %p170 = por %p168, %p169
      %p171 = scmp.ne.s32.totalorder %s162, %s163
      %p172 = scmp.eq.s32.totalorder %s26, 0
      %p173 = por %p171, %p172
      %p174 = scmp.ne.s32.totalorder %s162, %s163
      %p175 = scmp.eq.s32.totalorder %s27, 2
      %p176 = por %p174, %p175
      %p178 = scmp.ne.s32.totalorder %s163, %s177
      %p179 = scmp.eq.s32.totalorder %s27, 0
      %p180 = por %p178, %p179
      %s182 = sadd.s32 %s181, 1
      %p185 = scmp.eq.s32.totalorder %s21, 2
      %p186 = scmp.ne.s32.totalorder %s181, %s183
      %p187 = scmp.eq.s32.totalorder %s21, 0
      %p188 = por %p186, %p187
      %p189 = scmp.ne.s32.totalorder %s181, %s183
      %p190 = scmp.eq.s32.totalorder %s26, 2
      %p191 = por %p189, %p190
      %p192 = scmp.ne.s32.totalorder %s183, %s184
      %p193 = scmp.eq.s32.totalorder %s26, 0
      %p194 = por %p192, %p193
      %p195 = scmp.ne.s32.totalorder %s183, %s184
      %p196 = scmp.eq.s32.totalorder %s27, 2
      %p197 = por %p195, %p196
      %p199 = scmp.ne.s32.totalorder %s184, %s198
      %p200 = scmp.eq.s32.totalorder %s27, 0
      %p201 = por %p199, %p200
      %s203 = sadd.s32 %s202, 1
      %p206 = scmp.eq.s32.totalorder %s21, 2
      %p207 = scmp.ne.s32.totalorder %s202, %s204
      %p208 = scmp.eq.s32.totalorder %s21, 0
      %p209 = por %p207, %p208
      %p210 = scmp.ne.s32.totalorder %s202, %s204
      %p211 = scmp.eq.s32.totalorder %s26, 2
      %p212 = por %p210, %p211
      %p213 = scmp.ne.s32.totalorder %s204, %s205
      %p214 = scmp.eq.s32.totalorder %s26, 0
      %p215 = por %p213, %p214
      %p216 = scmp.ne.s32.totalorder %s204, %s205
      %p217 = scmp.eq.s32.totalorder %s27, 2
      %p218 = por %p216, %p217
      %p220 = scmp.ne.s32.totalorder %s205, %s219
      %p221 = scmp.eq.s32.totalorder %s27, 0
      %p222 = por %p220, %p221
      %s224 = sadd.s32 %s223, 1
      %p227 = scmp.eq.s32.totalorder %s21, 2
      %p228 = scmp.ne.s32.totalorder %s223, %s225
      %p229 = scmp.eq.s32.totalorder %s21, 0
      %p230 = por %p228, %p229
      %p231 = scmp.ne.s32.totalorder %s223, %s225
      %p232 = scmp.eq.s32.totalorder %s26, 2
      %p233 = por %p231, %p232
      %p234 = scmp.ne.s32.totalorder %s225, %s226
      %p235 = scmp.eq.s32.totalorder %s26, 0
      %p236 = por %p234, %p235
      %p237 = scmp.ne.s32.totalorder %s225, %s226
      %p238 = scmp.eq.s32.totalorder %s27, 2
      %p239 = por %p237, %p238
      %p241 = scmp.ne.s32.totalorder %s226, %s240
      %p242 = scmp.eq.s32.totalorder %s27, 0
      %p243 = por %p241, %p242
      %s245 = sadd.s32 %s244, 1
      %p248 = scmp.eq.s32.totalorder %s21, 2
      %p249 = scmp.ne.s32.totalorder %s244, %s246
      %p250 = scmp.eq.s32.totalorder %s21, 0
      %p251 = por %p249, %p250
      %p252 = scmp.ne.s32.totalorder %s244, %s246
      %p253 = scmp.eq.s32.totalorder %s26, 2
      %p254 = por %p252, %p253
      %p255 = scmp.ne.s32.totalorder %s246, %s247
      %p256 = scmp.eq.s32.totalorder %s26, 0
      %p257 = por %p255, %p256
      %p258 = scmp.ne.s32.totalorder %s246, %s247
      %p259 = scmp.eq.s32.totalorder %s27, 2
      %p260 = por %p258, %p259
      %p262 = scmp.ne.s32.totalorder %s247, %s261
      %p263 = scmp.eq.s32.totalorder %s27, 0
      %p264 = por %p262, %p263
      %s265 = ssub.s32 %s21, %s28
      %p266 = scmp.eq.s32.totalorder %s265, 0
      %s268 = sadd.s32 %s267, 1
      %s269 = scalar_select %p266, %s267, %s268
      %p272 = pneg %p266
      %p273 = scmp.eq.s32.totalorder %s21, 2
      %p274 = por %p272, %p273
      %p275 = scmp.ne.s32.totalorder %s267, %s270
      %p276 = scmp.eq.s32.totalorder %s21, 0
      %p277 = por %p275, %p276
      %p278 = scmp.ne.s32.totalorder %s267, %s270
      %p279 = scmp.eq.s32.totalorder %s26, 2
      %p280 = por %p278, %p279
      %p281 = scmp.ne.s32.totalorder %s270, %s271
      %p282 = scmp.eq.s32.totalorder %s26, 0
      %p283 = por %p281, %p282
      %p284 = scmp.ne.s32.totalorder %s270, %s271
      %p285 = scmp.eq.s32.totalorder %s27, 2
      %p286 = por %p284, %p285
      %p288 = scmp.ne.s32.totalorder %s271, %s287
      %p289 = scmp.eq.s32.totalorder %s27, 0
      %p290 = por %p288, %p289
      %p291 = scmp.le.s32.totalorder 1, %s21
      %p292 = scmp.lt.s32.totalorder %s21, 4
      %p293 = pnand %p291, %p292
      %p294 = pneg %p293
      // Predicated region
      $region9: #{tpu_custom_call.1} parent=5 // pred_check
        _
      $region10: #{tpu_custom_call.1} parent=5 // pred_check_branch
        %296 = sbr.rel (%p293) target = $region12
      $region11: #{tpu_custom_call.1} parent=5 // pred_region
        %s297 = ssub.s32 %s21, 1
        // Predicated region
        $region13: #{tpu_custom_call.1} parent=11 // pred_check
          %p298 = pneg %p68
        $region14: #{tpu_custom_call.1} parent=11 // pred_check_branch
          %300 = sbr.rel (%p298) target = $region16
        $region15: #{tpu_custom_call.1} parent=11 // pred_region
          _
        $region16: #{tpu_custom_call.1} parent=11 // pred_fallthru
          _
        // Predicated region
        $region17: #{tpu_custom_call.1} parent=11 // pred_check
          %p301 = pneg %p89
        $region18: #{tpu_custom_call.1} parent=11 // pred_check_branch
          %303 = sbr.rel (%p301) target = $region20
        $region19: #{tpu_custom_call.1} parent=11 // pred_region
          _
        $region20: #{tpu_custom_call.1} parent=11 // pred_fallthru
          _
        // Predicated region
        $region21: #{tpu_custom_call.1} parent=11 // pred_check
          %p304 = pneg %p110
        $region22: #{tpu_custom_call.1} parent=11 // pred_check_branch
          %306 = sbr.rel (%p304) target = $region24
        $region23: #{tpu_custom_call.1} parent=11 // pred_region
          _
        $region24: #{tpu_custom_call.1} parent=11 // pred_fallthru
          _
        // Predicated region
        $region25: #{tpu_custom_call.1} parent=11 // pred_check
          %p307 = pneg %p131
        $region26: #{tpu_custom_call.1} parent=11 // pred_check_branch
          %309 = sbr.rel (%p307) target = $region28
        $region27: #{tpu_custom_call.1} parent=11 // pred_region
          _
        $region28: #{tpu_custom_call.1} parent=11 // pred_fallthru
          _
        // Predicated region
        $region29: #{tpu_custom_call.1} parent=11 // pred_check
          %p310 = pneg %p152
        $region30: #{tpu_custom_call.1} parent=11 // pred_check_branch
          %312 = sbr.rel (%p310) target = $region32
        $region31: #{tpu_custom_call.1} parent=11 // pred_region
          _
        $region32: #{tpu_custom_call.1} parent=11 // pred_fallthru
          _
        // Predicated region
        $region33: #{tpu_custom_call.1} parent=11 // pred_check
          %p313 = pneg %p173
        $region34: #{tpu_custom_call.1} parent=11 // pred_check_branch
          %315 = sbr.rel (%p313) target = $region36
        $region35: #{tpu_custom_call.1} parent=11 // pred_region
          _
        $region36: #{tpu_custom_call.1} parent=11 // pred_fallthru
          _
        // Predicated region
        $region37: #{tpu_custom_call.1} parent=11 // pred_check
          %p316 = pneg %p194
        $region38: #{tpu_custom_call.1} parent=11 // pred_check_branch
          %318 = sbr.rel (%p316) target = $region40
        $region39: #{tpu_custom_call.1} parent=11 // pred_region
          _
        $region40: #{tpu_custom_call.1} parent=11 // pred_fallthru
          _
        // Predicated region
        $region41: #{tpu_custom_call.1} parent=11 // pred_check
          %p319 = pneg %p215
        $region42: #{tpu_custom_call.1} parent=11 // pred_check_branch
          %321 = sbr.rel (%p319) target = $region44
        $region43: #{tpu_custom_call.1} parent=11 // pred_region
          _
        $region44: #{tpu_custom_call.1} parent=11 // pred_fallthru
          _
        // Predicated region
        $region45: #{tpu_custom_call.1} parent=11 // pred_check
          %p322 = pneg %p236
        $region46: #{tpu_custom_call.1} parent=11 // pred_check_branch
          %324 = sbr.rel (%p322) target = $region48
        $region47: #{tpu_custom_call.1} parent=11 // pred_region
          %s326 = ssub.s32 8192, 8192
          %327 = vsyncadd [#allocation3], %s326
          %s328 = sshll.u32 [#allocation2], 4
          %s329 = int_to_ptr.vmem [resolvable:$true] %s328
          %334 = dma.hbm_to_vmem [thread:$0]  %s9, 8192, %s329, [#allocation3], 256, 256, 16
        $region48: #{tpu_custom_call.1} parent=11 // pred_fallthru
          _
        // Predicated region
        $region49: #{tpu_custom_call.1} parent=11 // pred_check
          %p335 = pneg %p257
        $region50: #{tpu_custom_call.1} parent=11 // pred_check_branch
          %337 = sbr.rel (%p335) target = $region52
        $region51: #{tpu_custom_call.1} parent=11 // pred_region
          _
        $region52: #{tpu_custom_call.1} parent=11 // pred_fallthru
          _
      $region12: #{tpu_custom_call.1} parent=5 // pred_fallthru
        _
      %p338 = scmp.lt.s32.totalorder %s21, 3
      // Predicated region
      $region53: #{tpu_custom_call.1} parent=5 // pred_check
        %p339 = pneg %p338
      $region54: #{tpu_custom_call.1} parent=5 // pred_check_branch
        %341 = sbr.rel (%p339) target = $region56
      $region55: #{tpu_custom_call.1} parent=5 // pred_region
        // Predicated region
        $region57: #{tpu_custom_call.1} parent=55 // pred_check
          %p342 = pneg %p41
        $region58: #{tpu_custom_call.1} parent=55 // pred_check_branch
          %344 = sbr.rel (%p342) target = $region60
        $region59: #{tpu_custom_call.1} parent=55 // pred_region
          %s345 = smul.u32 16, %s21
          %p346 = scmp.lt.s32.totalorder %s345, 47
          %s347 = scalar_select %p346, %s345, 47
          %s348 = smul.addr %s347, 8
          %s349 = scalar_lea.vmem %s0, %s348
          %s350 = smul.u32 16, %s21
        $region60: #{tpu_custom_call.1} parent=55 // pred_fallthru
          _
      $region56: #{tpu_custom_call.1} parent=5 // pred_fallthru
        _
      %p351 = scmp.le.s32.totalorder 1, %s21
      %p352 = scmp.lt.s32.totalorder %s21, 4
      %p353 = pnand %p351, %p352
      %p354 = pneg %p353
      // Predicated region
      $region61: #{tpu_custom_call.1} parent=5 // pred_check
        _
      $region62: #{tpu_custom_call.1} parent=5 // pred_check_branch
        %356 = sbr.rel (%p353) target = $region64
      $region63: #{tpu_custom_call.1} parent=5 // pred_region
        %s357 = ssub.s32 %s21, 1
        // Predicated region
        $region65: #{tpu_custom_call.1} parent=63 // pred_check
          %p358 = pneg %p236
        $region66: #{tpu_custom_call.1} parent=63 // pred_check_branch
          %360 = sbr.rel (%p358) target = $region68
        $region67: #{tpu_custom_call.1} parent=63 // pred_region
          %361 = dma.done [#allocation3], 8192
        $region68: #{tpu_custom_call.1} parent=63 // pred_fallthru
          _
        %s362 = smul.u32 16, %s26
        %p363 = scmp.lt.s32.totalorder %s362, 47
        %s364 = scalar_select %p363, %s362, 47
        %s365 = smul.addr %s364, 8
        %s366 = scalar_lea.vmem %s0, %s365
        %p367 = pneg %p47
        %p368 = pneg %p44
        %p369 = pneg %p68
        %p370 = pneg %p65
        %p371 = pneg %p89
        %p372 = pneg %p86
        %p373 = pneg %p110
        %p374 = pneg %p107
        %p375 = pneg %p131
        %p376 = pneg %p128
        %p377 = pneg %p152
        %p378 = pneg %p149
        %p379 = pneg %p173
        %p380 = pneg %p170
        %p381 = pneg %p194
        %p382 = pneg %p191
        %p383 = pneg %p215
        %p384 = pneg %p212
        %p385 = pneg %p236
        %p386 = pneg %p233
        %p387 = pneg %p257
        %p388 = pneg %p254
        %p389 = pneg %p283
        %p390 = pneg %p280
        %s391 = sand.u32 %s270, 1
        %s392 = scalar_lea.sflag [#allocation4], %s391
        %s393 = sand.u32 %s270, 1
        %s394 = smul.addr %s393, 256
        %s395 = scalar_lea.vmem [#allocation5], %s394
        %s396 = smul.u32 16, %s26
        %p397 = scmp.lt.s32.totalorder %s396, 47
        %s398 = scalar_select %p397, %s396, 47
        %s399 = smul.addr %s398, 8
        %s400 = scalar_lea.vmem %s0, %s399
        %s401 = smul.u32 16, %s26
        %s402 = smul.u32 16, %s26
        %v403 = vld [vmem:[%s400] sm:$0xff]
        %v404 = vld [vmem:[%s400 + $0x8] sm:$0xff]
        %v405 = vld [vmem:[%s400 + $0x10] sm:$0xff]
        %v406 = vld [vmem:[%s400 + $0x18] sm:$0xff]
        %v407 = vld [vmem:[%s400 + $0x20] sm:$0xff]
        %v408 = vld [vmem:[%s400 + $0x28] sm:$0xff]
        %v409 = vld [vmem:[%s400 + $0x30] sm:$0xff]
        %v410 = vld [vmem:[%s400 + $0x38] sm:$0xff]
        %v411 = vld [vmem:[%s400 + $0x40] sm:$0xff]
        %v412 = vld [vmem:[%s400 + $0x48] sm:$0xff]
        %v413 = vld [vmem:[%s400 + $0x50] sm:$0xff]
        %v414 = vld [vmem:[%s400 + $0x58] sm:$0xff]
        %v415 = vld [vmem:[%s400 + $0x60] sm:$0xff]
        %v416 = vld [vmem:[%s400 + $0x68] sm:$0xff]
        %v417 = vld [vmem:[%s400 + $0x70] sm:$0xff]
        %v418 = vld [vmem:[%s400 + $0x78] sm:$0xff]
        %v419 = vld [vmem:[%s1] sm:$0xff]
        %v420 = vld [vmem:[%s1 + $0x8] sm:$0xff]
        %v421 = vld [vmem:[%s1 + $0x10] sm:$0xff]
        %v422 = vld [vmem:[%s1 + $0x18] sm:$0xff]
        %v423 = vld [vmem:[%s2] sm:$0x1]
        %v425 = vlaneseq
        %v426 = vshrl.u32 %v425, 7
        %v427 = vsub.s32 0, %v426
        %v428 = vrot.slane %v423, %v427
        %vm430 = vcmask 261120
        %v432 = vsel %vm430, %v403, 0
        %v435 = vsel %vm430, %v404, 0
        %v438 = vsel %vm430, %v405, 0
        %v441 = vsel %vm430, %v406, 0
        %v444 = vsel %vm430, %v407, 0
        %v447 = vsel %vm430, %v408, 0
        %v450 = vsel %vm430, %v409, 0
        %v453 = vsel %vm430, %v410, 0
        %v456 = vsel %vm430, %v411, 0
        %v459 = vsel %vm430, %v412, 0
        %v462 = vsel %vm430, %v413, 0
        %v465 = vsel %vm430, %v414, 0
        %v468 = vsel %vm430, %v415, 0
        %v471 = vsel %vm430, %v416, 0
        %v474 = vsel %vm430, %v417, 0
        %v477 = vsel %vm430, %v418, 0
        %479 = vmatprep.subr.mxu0 0.0
        %480 = vmatpush1.msra.mxu0 0.0
        %481 = vmatprep.subr.mxu0 0.0
        %482 = vmatpush1.msra.mxu0 0.0
        %483 = vmatprep.subr.mxu0 0.0
        %484 = vmatpush1.msra.mxu0 0.0
        %485 = vmatprep.subr.mxu0 0.0
        %486 = vmatpush1.msra.mxu0 0.0
        %487 = vmatprep.subr.mxu0 0.0
        %488 = vmatpush1.msra.mxu0 0.0
        %489 = vmatprep.subr.mxu0 0.0
        %490 = vmatpush1.msra.mxu0 0.0
        %491 = vmatprep.subr.mxu0 0.0
        %492 = vmatpush1.msra.mxu0 0.0
        %493 = vmatprep.subr.mxu0 0.0
        %494 = vmatpush1.msra.mxu0 0.0
        %495 = vmatprep.subr.mxu0 0.0
        %496 = vmatpush1.msra.mxu0 0.0
        %497 = vmatprep.subr.mxu0 0.0
        %498 = vmatpush1.msra.mxu0 0.0
        %499 = vmatprep.subr.mxu0 0.0
        %500 = vmatpush1.msra.mxu0 0.0
        %501 = vmatprep.subr.mxu0 0.0
        %502 = vmatpush1.msra.mxu0 0.0
        %503 = vmatprep.subr.mxu0 0.0
        %504 = vmatpush1.msra.mxu0 %v422
        %505 = vmatprep.subr.mxu0 0.0
        %506 = vmatpush1.msra.mxu0 %v421
        %507 = vmatprep.subr.mxu0 0.0
        %508 = vmatpush1.msra.mxu0 %v420
        %509 = vmatprep.subr.mxu0 0.0
        %510 = vmatpush1.msra.mxu0 %v419
        %511 = vmatprep.subr.mxu0 0.0
        %512 = vmatpush2.msra.mxu0 0.0
        %513 = vmatprep.subr.mxu0 0.0
        %514 = vmatpush2.msra.mxu0 0.0
        %515 = vmatprep.subr.mxu0 0.0
        %516 = vmatpush2.msra.mxu0 0.0
        %517 = vmatprep.subr.mxu0 0.0
        %518 = vmatpush2.msra.mxu0 0.0
        %519 = vmatprep.subr.mxu0 0.0
        %520 = vmatpush2.msra.mxu0 0.0
        %521 = vmatprep.subr.mxu0 0.0
        %522 = vmatpush2.msra.mxu0 0.0
        %523 = vmatprep.subr.mxu0 0.0
        %524 = vmatpush2.msra.mxu0 0.0
        %525 = vmatprep.subr.mxu0 0.0
        %526 = vmatpush2.msra.mxu0 0.0
        %527 = vmatprep.subr.mxu0 0.0
        %528 = vmatpush2.msra.mxu0 0.0
        %529 = vmatprep.subr.mxu0 0.0
        %530 = vmatpush2.msra.mxu0 0.0
        %531 = vmatprep.subr.mxu0 0.0
        %532 = vmatpush2.msra.mxu0 0.0
        %533 = vmatprep.subr.mxu0 0.0
        %534 = vmatpush2.msra.mxu0 0.0
        %535 = vmatprep.subr.mxu0 0.0
        %536 = vmatpush2.msra.mxu0 0.0
        %537 = vmatprep.subr.mxu0 0.0
        %538 = vmatpush2.msra.mxu0 0.0
        %539 = vmatprep.subr.mxu0 0.0
        %540 = vmatpush2.msra.mxu0 0.0
        %541 = vmatprep.subr.mxu0 0.0
        %542 = vmatpush2.msra.mxu0 0.0
        %543 = vmatprep.mubr.f32.mxu0 0.0
        %544 = vmatmul.mubr.f32.gmra.mxu0 %v432
        %v545 = vpop.f32.mrf.mxu0
        %v546 = vadd.f32 %v428, %v545
        %v547 = vpop.f32.mrf.mxu0
        %548 = vmatprep.mubr.f32.mxu0 0.0
        %549 = vmatmul.mubr.f32.gmra.mxu0 %v435
        %v550 = vpop.f32.mrf.mxu0
        %v551 = vadd.f32 %v428, %v550
        %v552 = vpop.f32.mrf.mxu0
        %553 = vmatprep.mubr.f32.mxu0 0.0
        %554 = vmatmul.mubr.f32.gmra.mxu0 %v438
        %v555 = vpop.f32.mrf.mxu0
        %v556 = vadd.f32 %v428, %v555
        %v557 = vpop.f32.mrf.mxu0
        %558 = vmatprep.mubr.f32.mxu0 0.0
        %559 = vmatmul.mubr.f32.gmra.mxu0 %v441
        %v560 = vpop.f32.mrf.mxu0
        %v561 = vadd.f32 %v428, %v560
        %v562 = vpop.f32.mrf.mxu0
        %563 = vmatprep.mubr.f32.mxu0 0.0
        %564 = vmatmul.mubr.f32.gmra.mxu0 %v444
        %v565 = vpop.f32.mrf.mxu0
        %v566 = vadd.f32 %v428, %v565
        %v567 = vpop.f32.mrf.mxu0
        %568 = vmatprep.mubr.f32.mxu0 0.0
        %569 = vmatmul.mubr.f32.gmra.mxu0 %v447
        %v570 = vpop.f32.mrf.mxu0
        %v571 = vadd.f32 %v428, %v570
        %v572 = vpop.f32.mrf.mxu0
        %573 = vmatprep.mubr.f32.mxu0 0.0
        %574 = vmatmul.mubr.f32.gmra.mxu0 %v450
        %v575 = vpop.f32.mrf.mxu0
        %v576 = vadd.f32 %v428, %v575
        %v577 = vpop.f32.mrf.mxu0
        %578 = vmatprep.mubr.f32.mxu0 0.0
        %579 = vmatmul.mubr.f32.gmra.mxu0 %v453
        %v580 = vpop.f32.mrf.mxu0
        %v581 = vadd.f32 %v428, %v580
        %v582 = vpop.f32.mrf.mxu0
        %583 = vmatprep.mubr.f32.mxu0 0.0
        %584 = vmatmul.mubr.f32.gmra.mxu0 %v456
        %v585 = vpop.f32.mrf.mxu0
        %v586 = vadd.f32 %v428, %v585
        %v587 = vpop.f32.mrf.mxu0
        %588 = vmatprep.mubr.f32.mxu0 0.0
        %589 = vmatmul.mubr.f32.gmra.mxu0 %v459
        %v590 = vpop.f32.mrf.mxu0
        %v591 = vadd.f32 %v428, %v590
        %v592 = vpop.f32.mrf.mxu0
        %593 = vmatprep.mubr.f32.mxu0 0.0
        %594 = vmatmul.mubr.f32.gmra.mxu0 %v462
        %v595 = vpop.f32.mrf.mxu0
        %v596 = vadd.f32 %v428, %v595
        %v597 = vpop.f32.mrf.mxu0
        %598 = vmatprep.mubr.f32.mxu0 0.0
        %599 = vmatmul.mubr.f32.gmra.mxu0 %v465
        %v600 = vpop.f32.mrf.mxu0
        %v601 = vadd.f32 %v428, %v600
        %v602 = vpop.f32.mrf.mxu0
        %603 = vmatprep.mubr.f32.mxu0 0.0
        %604 = vmatmul.mubr.f32.gmra.mxu0 %v468
        %v605 = vpop.f32.mrf.mxu0
        %v606 = vadd.f32 %v428, %v605
        %v607 = vpop.f32.mrf.mxu0
        %608 = vmatprep.mubr.f32.mxu0 0.0
        %609 = vmatmul.mubr.f32.gmra.mxu0 %v471
        %v610 = vpop.f32.mrf.mxu0
        %v611 = vadd.f32 %v428, %v610
        %v612 = vpop.f32.mrf.mxu0
        %613 = vmatprep.mubr.f32.mxu0 0.0
        %614 = vmatmul.mubr.f32.gmra.mxu0 %v474
        %v615 = vpop.f32.mrf.mxu0
        %v616 = vadd.f32 %v428, %v615
        %v617 = vpop.f32.mrf.mxu0
        %618 = vmatprep.mubr.f32.mxu0 0.0
        %619 = vmatmul.mubr.f32.gmra.mxu0 %v477
        %v620 = vpop.f32.mrf.mxu0
        %v621 = vadd.f32 %v428, %v620
        %v622 = vpop.f32.mrf.mxu0
        %623 = vdwg.mxu0
        %v624 = vmax.f32 %v546, 0.0
        %v625 = vmax.f32 %v551, 0.0
        %v626 = vmax.f32 %v556, 0.0
        %v627 = vmax.f32 %v561, 0.0
        %v628 = vmax.f32 %v566, 0.0
        %v629 = vmax.f32 %v571, 0.0
        %v630 = vmax.f32 %v576, 0.0
        %v631 = vmax.f32 %v581, 0.0
        %v632 = vmax.f32 %v586, 0.0
        %v633 = vmax.f32 %v591, 0.0
        %v634 = vmax.f32 %v596, 0.0
        %v635 = vmax.f32 %v601, 0.0
        %v636 = vmax.f32 %v606, 0.0
        %v637 = vmax.f32 %v611, 0.0
        %v638 = vmax.f32 %v616, 0.0
        %v639 = vmax.f32 %v621, 0.0
        %v640 = vld [vmem:[%s3] sm:$0xff]
        %v641 = vld [vmem:[%s3 + $0x8] sm:$0xff]
        %v642 = vld [vmem:[%s3 + $0x10] sm:$0xff]
        %v643 = vld [vmem:[%s3 + $0x18] sm:$0xff]
        %v644 = vld [vmem:[%s4] sm:$0x1]
        %v646 = vlaneseq
        %v647 = vshrl.u32 %v646, 7
        %v648 = vsub.s32 0, %v647
        %v649 = vrot.slane %v644, %v648
        %v652 = vsel %vm430, %v624, 0
        %v655 = vsel %vm430, %v625, 0
        %v658 = vsel %vm430, %v626, 0
        %v661 = vsel %vm430, %v627, 0
        %v664 = vsel %vm430, %v628, 0
        %v667 = vsel %vm430, %v629, 0
        %v670 = vsel %vm430, %v630, 0
        %v673 = vsel %vm430, %v631, 0
        %v676 = vsel %vm430, %v632, 0
        %v679 = vsel %vm430, %v633, 0
        %v682 = vsel %vm430, %v634, 0
        %v685 = vsel %vm430, %v635, 0
        %v688 = vsel %vm430, %v636, 0
        %v691 = vsel %vm430, %v637, 0
        %v694 = vsel %vm430, %v638, 0
        %v697 = vsel %vm430, %v639, 0
        %699 = vmatprep.subr.mxu0 0.0
        %700 = vmatpush1.msra.mxu0 0.0
        %701 = vmatprep.subr.mxu0 0.0
        %702 = vmatpush1.msra.mxu0 0.0
        %703 = vmatprep.subr.mxu0 0.0
        %704 = vmatpush1.msra.mxu0 0.0
        %705 = vmatprep.subr.mxu0 0.0
        %706 = vmatpush1.msra.mxu0 0.0
        %707 = vmatprep.subr.mxu0 0.0
        %708 = vmatpush1.msra.mxu0 0.0
        %709 = vmatprep.subr.mxu0 0.0
        %710 = vmatpush1.msra.mxu0 0.0
        %711 = vmatprep.subr.mxu0 0.0
        %712 = vmatpush1.msra.mxu0 0.0
        %713 = vmatprep.subr.mxu0 0.0
        %714 = vmatpush1.msra.mxu0 0.0
        %715 = vmatprep.subr.mxu0 0.0
        %716 = vmatpush1.msra.mxu0 0.0
        %717 = vmatprep.subr.mxu0 0.0
        %718 = vmatpush1.msra.mxu0 0.0
        %719 = vmatprep.subr.mxu0 0.0
        %720 = vmatpush1.msra.mxu0 0.0
        %721 = vmatprep.subr.mxu0 0.0
        %722 = vmatpush1.msra.mxu0 0.0
        %723 = vmatprep.subr.mxu0 0.0
        %724 = vmatpush1.msra.mxu0 %v643
        %725 = vmatprep.subr.mxu0 0.0
        %726 = vmatpush1.msra.mxu0 %v642
        %727 = vmatprep.subr.mxu0 0.0
        %728 = vmatpush1.msra.mxu0 %v641
        %729 = vmatprep.subr.mxu0 0.0
        %730 = vmatpush1.msra.mxu0 %v640
        %731 = vmatprep.subr.mxu0 0.0
        %732 = vmatpush2.msra.mxu0 0.0
        %733 = vmatprep.subr.mxu0 0.0
        %734 = vmatpush2.msra.mxu0 0.0
        %735 = vmatprep.subr.mxu0 0.0
        %736 = vmatpush2.msra.mxu0 0.0
        %737 = vmatprep.subr.mxu0 0.0
        %738 = vmatpush2.msra.mxu0 0.0
        %739 = vmatprep.subr.mxu0 0.0
        %740 = vmatpush2.msra.mxu0 0.0
        %741 = vmatprep.subr.mxu0 0.0
        %742 = vmatpush2.msra.mxu0 0.0
        %743 = vmatprep.subr.mxu0 0.0
        %744 = vmatpush2.msra.mxu0 0.0
        %745 = vmatprep.subr.mxu0 0.0
        %746 = vmatpush2.msra.mxu0 0.0
        %747 = vmatprep.subr.mxu0 0.0
        %748 = vmatpush2.msra.mxu0 0.0
        %749 = vmatprep.subr.mxu0 0.0
        %750 = vmatpush2.msra.mxu0 0.0
        %751 = vmatprep.subr.mxu0 0.0
        %752 = vmatpush2.msra.mxu0 0.0
        %753 = vmatprep.subr.mxu0 0.0
        %754 = vmatpush2.msra.mxu0 0.0
        %755 = vmatprep.subr.mxu0 0.0
        %756 = vmatpush2.msra.mxu0 0.0
        %757 = vmatprep.subr.mxu0 0.0
        %758 = vmatpush2.msra.mxu0 0.0
        %759 = vmatprep.subr.mxu0 0.0
        %760 = vmatpush2.msra.mxu0 0.0
        %761 = vmatprep.subr.mxu0 0.0
        %762 = vmatpush2.msra.mxu0 0.0
        %763 = vmatprep.mubr.f32.mxu0 0.0
        %764 = vmatmul.mubr.f32.gmra.mxu0 %v652
        %v765 = vpop.f32.mrf.mxu0
        %v766 = vadd.f32 %v649, %v765
        %v767 = vpop.f32.mrf.mxu0
        %768 = vmatprep.mubr.f32.mxu0 0.0
        %769 = vmatmul.mubr.f32.gmra.mxu0 %v655
        %v770 = vpop.f32.mrf.mxu0
        %v771 = vadd.f32 %v649, %v770
        %v772 = vpop.f32.mrf.mxu0
        %773 = vmatprep.mubr.f32.mxu0 0.0
        %774 = vmatmul.mubr.f32.gmra.mxu0 %v658
        %v775 = vpop.f32.mrf.mxu0
        %v776 = vadd.f32 %v649, %v775
        %v777 = vpop.f32.mrf.mxu0
        %778 = vmatprep.mubr.f32.mxu0 0.0
        %779 = vmatmul.mubr.f32.gmra.mxu0 %v661
        %v780 = vpop.f32.mrf.mxu0
        %v781 = vadd.f32 %v649, %v780
        %v782 = vpop.f32.mrf.mxu0
        %783 = vmatprep.mubr.f32.mxu0 0.0
        %784 = vmatmul.mubr.f32.gmra.mxu0 %v664
        %v785 = vpop.f32.mrf.mxu0
        %v786 = vadd.f32 %v649, %v785
        %v787 = vpop.f32.mrf.mxu0
        %788 = vmatprep.mubr.f32.mxu0 0.0
        %789 = vmatmul.mubr.f32.gmra.mxu0 %v667
        %v790 = vpop.f32.mrf.mxu0
        %v791 = vadd.f32 %v649, %v790
        %v792 = vpop.f32.mrf.mxu0
        %793 = vmatprep.mubr.f32.mxu0 0.0
        %794 = vmatmul.mubr.f32.gmra.mxu0 %v670
        %v795 = vpop.f32.mrf.mxu0
        %v796 = vadd.f32 %v649, %v795
        %v797 = vpop.f32.mrf.mxu0
        %798 = vmatprep.mubr.f32.mxu0 0.0
        %799 = vmatmul.mubr.f32.gmra.mxu0 %v673
        %v800 = vpop.f32.mrf.mxu0
        %v801 = vadd.f32 %v649, %v800
        %v802 = vpop.f32.mrf.mxu0
        %803 = vmatprep.mubr.f32.mxu0 0.0
        %804 = vmatmul.mubr.f32.gmra.mxu0 %v676
        %v805 = vpop.f32.mrf.mxu0
        %v806 = vadd.f32 %v649, %v805
        %v807 = vpop.f32.mrf.mxu0
        %808 = vmatprep.mubr.f32.mxu0 0.0
        %809 = vmatmul.mubr.f32.gmra.mxu0 %v679
        %v810 = vpop.f32.mrf.mxu0
        %v811 = vadd.f32 %v649, %v810
        %v812 = vpop.f32.mrf.mxu0
        %813 = vmatprep.mubr.f32.mxu0 0.0
        %814 = vmatmul.mubr.f32.gmra.mxu0 %v682
        %v815 = vpop.f32.mrf.mxu0
        %v816 = vadd.f32 %v649, %v815
        %v817 = vpop.f32.mrf.mxu0
        %818 = vmatprep.mubr.f32.mxu0 0.0
        %819 = vmatmul.mubr.f32.gmra.mxu0 %v685
        %v820 = vpop.f32.mrf.mxu0
        %v821 = vadd.f32 %v649, %v820
        %v822 = vpop.f32.mrf.mxu0
        %823 = vmatprep.mubr.f32.mxu0 0.0
        %824 = vmatmul.mubr.f32.gmra.mxu0 %v688
        %v825 = vpop.f32.mrf.mxu0
        %v826 = vadd.f32 %v649, %v825
        %v827 = vpop.f32.mrf.mxu0
        %828 = vmatprep.mubr.f32.mxu0 0.0
        %829 = vmatmul.mubr.f32.gmra.mxu0 %v691
        %v830 = vpop.f32.mrf.mxu0
        %v831 = vadd.f32 %v649, %v830
        %v832 = vpop.f32.mrf.mxu0
        %833 = vmatprep.mubr.f32.mxu0 0.0
        %834 = vmatmul.mubr.f32.gmra.mxu0 %v694
        %v835 = vpop.f32.mrf.mxu0
        %v836 = vadd.f32 %v649, %v835
        %v837 = vpop.f32.mrf.mxu0
        %838 = vmatprep.mubr.f32.mxu0 0.0
        %839 = vmatmul.mubr.f32.gmra.mxu0 %v697
        %v840 = vpop.f32.mrf.mxu0
        %v841 = vadd.f32 %v649, %v840
        %v842 = vpop.f32.mrf.mxu0
        %843 = vdwg.mxu0
        %v844 = vmax.f32 %v766, 0.0
        %v845 = vmax.f32 %v771, 0.0
        %v846 = vmax.f32 %v776, 0.0
        %v847 = vmax.f32 %v781, 0.0
        %v848 = vmax.f32 %v786, 0.0
        %v849 = vmax.f32 %v791, 0.0
        %v850 = vmax.f32 %v796, 0.0
        %v851 = vmax.f32 %v801, 0.0
        %v852 = vmax.f32 %v806, 0.0
        %v853 = vmax.f32 %v811, 0.0
        %v854 = vmax.f32 %v816, 0.0
        %v855 = vmax.f32 %v821, 0.0
        %v856 = vmax.f32 %v826, 0.0
        %v857 = vmax.f32 %v831, 0.0
        %v858 = vmax.f32 %v836, 0.0
        %v859 = vmax.f32 %v841, 0.0
        %v860 = vld [vmem:[%s5] sm:$0xff]
        %v861 = vld [vmem:[%s5 + $0x8] sm:$0xff]
        %v862 = vld [vmem:[%s5 + $0x10] sm:$0xff]
        %v863 = vld [vmem:[%s5 + $0x18] sm:$0xff]
        %v864 = vld [vmem:[%s5 + $0x20] sm:$0xff]
        %v865 = vld [vmem:[%s5 + $0x28] sm:$0xff]
        %v866 = vld [vmem:[%s5 + $0x30] sm:$0xff]
        %v867 = vld [vmem:[%s5 + $0x38] sm:$0xff]
        %v868 = vld [vmem:[%s6] sm:$0x1]
        %v870 = vlaneseq
        %v871 = vshrl.u32 %v870, 7
        %v872 = vsub.s32 0, %v871
        %v873 = vrot.slane %v868, %v872
        %vm875 = vcmask 523264
        %v877 = vsel %vm875, %v844, 0
        %v880 = vsel %vm875, %v845, 0
        %v883 = vsel %vm875, %v846, 0
        %v886 = vsel %vm875, %v847, 0
        %v889 = vsel %vm875, %v848, 0
        %v892 = vsel %vm875, %v849, 0
        %v895 = vsel %vm875, %v850, 0
        %v898 = vsel %vm875, %v851, 0
        %v901 = vsel %vm875, %v852, 0
        %v904 = vsel %vm875, %v853, 0
        %v907 = vsel %vm875, %v854, 0
        %v910 = vsel %vm875, %v855, 0
        %v913 = vsel %vm875, %v856, 0
        %v916 = vsel %vm875, %v857, 0
        %v919 = vsel %vm875, %v858, 0
        %v922 = vsel %vm875, %v859, 0
        %924 = vmatprep.subr.mxu0 0.0
        %925 = vmatpush1.msra.mxu0 0.0
        %926 = vmatprep.subr.mxu0 0.0
        %927 = vmatpush1.msra.mxu0 0.0
        %928 = vmatprep.subr.mxu0 0.0
        %929 = vmatpush1.msra.mxu0 0.0
        %930 = vmatprep.subr.mxu0 0.0
        %931 = vmatpush1.msra.mxu0 0.0
        %932 = vmatprep.subr.mxu0 0.0
        %933 = vmatpush1.msra.mxu0 0.0
        %934 = vmatprep.subr.mxu0 0.0
        %935 = vmatpush1.msra.mxu0 0.0
        %936 = vmatprep.subr.mxu0 0.0
        %937 = vmatpush1.msra.mxu0 0.0
        %938 = vmatprep.subr.mxu0 0.0
        %939 = vmatpush1.msra.mxu0 0.0
        %940 = vmatprep.subr.mxu0 0.0
        %941 = vmatpush1.msra.mxu0 %v867
        %942 = vmatprep.subr.mxu0 0.0
        %943 = vmatpush1.msra.mxu0 %v866
        %944 = vmatprep.subr.mxu0 0.0
        %945 = vmatpush1.msra.mxu0 %v865
        %946 = vmatprep.subr.mxu0 0.0
        %947 = vmatpush1.msra.mxu0 %v864
        %948 = vmatprep.subr.mxu0 0.0
        %949 = vmatpush1.msra.mxu0 %v863
        %950 = vmatprep.subr.mxu0 0.0
        %951 = vmatpush1.msra.mxu0 %v862
        %952 = vmatprep.subr.mxu0 0.0
        %953 = vmatpush1.msra.mxu0 %v861
        %954 = vmatprep.subr.mxu0 0.0
        %955 = vmatpush1.msra.mxu0 %v860
        %956 = vmatprep.subr.mxu0 0.0
        %957 = vmatpush2.msra.mxu0 0.0
        %958 = vmatprep.subr.mxu0 0.0
        %959 = vmatpush2.msra.mxu0 0.0
        %960 = vmatprep.subr.mxu0 0.0
        %961 = vmatpush2.msra.mxu0 0.0
        %962 = vmatprep.subr.mxu0 0.0
        %963 = vmatpush2.msra.mxu0 0.0
        %964 = vmatprep.subr.mxu0 0.0
        %965 = vmatpush2.msra.mxu0 0.0
        %966 = vmatprep.subr.mxu0 0.0
        %967 = vmatpush2.msra.mxu0 0.0
        %968 = vmatprep.subr.mxu0 0.0
        %969 = vmatpush2.msra.mxu0 0.0
        %970 = vmatprep.subr.mxu0 0.0
        %971 = vmatpush2.msra.mxu0 0.0
        %972 = vmatprep.subr.mxu0 0.0
        %973 = vmatpush2.msra.mxu0 0.0
        %974 = vmatprep.subr.mxu0 0.0
        %975 = vmatpush2.msra.mxu0 0.0
        %976 = vmatprep.subr.mxu0 0.0
        %977 = vmatpush2.msra.mxu0 0.0
        %978 = vmatprep.subr.mxu0 0.0
        %979 = vmatpush2.msra.mxu0 0.0
        %980 = vmatprep.subr.mxu0 0.0
        %981 = vmatpush2.msra.mxu0 0.0
        %982 = vmatprep.subr.mxu0 0.0
        %983 = vmatpush2.msra.mxu0 0.0
        %984 = vmatprep.subr.mxu0 0.0
        %985 = vmatpush2.msra.mxu0 0.0
        %986 = vmatprep.subr.mxu0 0.0
        %987 = vmatpush2.msra.mxu0 0.0
        %988 = vmatprep.mubr.f32.mxu0 0.0
        %989 = vmatmul.mubr.f32.gmra.mxu0 %v877
        %v990 = vpop.f32.mrf.mxu0
        %v991 = vadd.f32 %v873, %v990
        %v992 = vpop.f32.mrf.mxu0
        %993 = vmatprep.mubr.f32.mxu0 0.0
        %994 = vmatmul.mubr.f32.gmra.mxu0 %v880
        %v995 = vpop.f32.mrf.mxu0
        %v996 = vadd.f32 %v873, %v995
        %v997 = vpop.f32.mrf.mxu0
        %998 = vmatprep.mubr.f32.mxu0 0.0
        %999 = vmatmul.mubr.f32.gmra.mxu0 %v883
        %v1000 = vpop.f32.mrf.mxu0
        %v1001 = vadd.f32 %v873, %v1000
        %v1002 = vpop.f32.mrf.mxu0
        %1003 = vmatprep.mubr.f32.mxu0 0.0
        %1004 = vmatmul.mubr.f32.gmra.mxu0 %v886
        %v1005 = vpop.f32.mrf.mxu0
        %v1006 = vadd.f32 %v873, %v1005
        %v1007 = vpop.f32.mrf.mxu0
        %1008 = vmatprep.mubr.f32.mxu0 0.0
        %1009 = vmatmul.mubr.f32.gmra.mxu0 %v889
        %v1010 = vpop.f32.mrf.mxu0
        %v1011 = vadd.f32 %v873, %v1010
        %v1012 = vpop.f32.mrf.mxu0
        %1013 = vmatprep.mubr.f32.mxu0 0.0
        %1014 = vmatmul.mubr.f32.gmra.mxu0 %v892
        %v1015 = vpop.f32.mrf.mxu0
        %v1016 = vadd.f32 %v873, %v1015
        %v1017 = vpop.f32.mrf.mxu0
        %1018 = vmatprep.mubr.f32.mxu0 0.0
        %1019 = vmatmul.mubr.f32.gmra.mxu0 %v895
        %v1020 = vpop.f32.mrf.mxu0
        %v1021 = vadd.f32 %v873, %v1020
        %v1022 = vpop.f32.mrf.mxu0
        %1023 = vmatprep.mubr.f32.mxu0 0.0
        %1024 = vmatmul.mubr.f32.gmra.mxu0 %v898
        %v1025 = vpop.f32.mrf.mxu0
        %v1026 = vadd.f32 %v873, %v1025
        %v1027 = vpop.f32.mrf.mxu0
        %1028 = vmatprep.mubr.f32.mxu0 0.0
        %1029 = vmatmul.mubr.f32.gmra.mxu0 %v901
        %v1030 = vpop.f32.mrf.mxu0
        %v1031 = vadd.f32 %v873, %v1030
        %v1032 = vpop.f32.mrf.mxu0
        %1033 = vmatprep.mubr.f32.mxu0 0.0
        %1034 = vmatmul.mubr.f32.gmra.mxu0 %v904
        %v1035 = vpop.f32.mrf.mxu0
        %v1036 = vadd.f32 %v873, %v1035
        %v1037 = vpop.f32.mrf.mxu0
        %1038 = vmatprep.mubr.f32.mxu0 0.0
        %1039 = vmatmul.mubr.f32.gmra.mxu0 %v907
        %v1040 = vpop.f32.mrf.mxu0
        %v1041 = vadd.f32 %v873, %v1040
        %v1042 = vpop.f32.mrf.mxu0
        %1043 = vmatprep.mubr.f32.mxu0 0.0
        %1044 = vmatmul.mubr.f32.gmra.mxu0 %v910
        %v1045 = vpop.f32.mrf.mxu0
        %v1046 = vadd.f32 %v873, %v1045
        %v1047 = vpop.f32.mrf.mxu0
        %1048 = vmatprep.mubr.f32.mxu0 0.0
        %1049 = vmatmul.mubr.f32.gmra.mxu0 %v913
        %v1050 = vpop.f32.mrf.mxu0
        %v1051 = vadd.f32 %v873, %v1050
        %v1052 = vpop.f32.mrf.mxu0
        %1053 = vmatprep.mubr.f32.mxu0 0.0
        %1054 = vmatmul.mubr.f32.gmra.mxu0 %v916
        %v1055 = vpop.f32.mrf.mxu0
        %v1056 = vadd.f32 %v873, %v1055
        %v1057 = vpop.f32.mrf.mxu0
        %1058 = vmatprep.mubr.f32.mxu0 0.0
        %1059 = vmatmul.mubr.f32.gmra.mxu0 %v919
        %v1060 = vpop.f32.mrf.mxu0
        %v1061 = vadd.f32 %v873, %v1060
        %v1062 = vpop.f32.mrf.mxu0
        %1063 = vmatprep.mubr.f32.mxu0 0.0
        %1064 = vmatmul.mubr.f32.gmra.mxu0 %v922
        %v1065 = vpop.f32.mrf.mxu0
        %v1066 = vadd.f32 %v873, %v1065
        %v1067 = vpop.f32.mrf.mxu0
        %1068 = vdwg.mxu0
        %v1069 = vmax.f32 %v991, 0.0
        %v1070 = vmax.f32 %v996, 0.0
        %v1071 = vmax.f32 %v1001, 0.0
        %v1072 = vmax.f32 %v1006, 0.0
        %v1073 = vmax.f32 %v1011, 0.0
        %v1074 = vmax.f32 %v1016, 0.0
        %v1075 = vmax.f32 %v1021, 0.0
        %v1076 = vmax.f32 %v1026, 0.0
        %v1077 = vmax.f32 %v1031, 0.0
        %v1078 = vmax.f32 %v1036, 0.0
        %v1079 = vmax.f32 %v1041, 0.0
        %v1080 = vmax.f32 %v1046, 0.0
        %v1081 = vmax.f32 %v1051, 0.0
        %v1082 = vmax.f32 %v1056, 0.0
        %v1083 = vmax.f32 %v1061, 0.0
        %v1084 = vmax.f32 %v1066, 0.0
        %v1085 = vld [vmem:[%s7] sm:$0xff]
        %v1086 = vld [vmem:[%s7 + $0x8] sm:$0xff]
        %v1087 = vld [vmem:[%s7 + $0x10] sm:$0xff]
        %v1088 = vld [vmem:[%s7 + $0x18] sm:$0xff]
        %v1089 = vld [vmem:[%s7 + $0x20] sm:$0xff]
        %v1090 = vld [vmem:[%s7 + $0x28] sm:$0xff]
        %v1091 = vld [vmem:[%s7 + $0x30] sm:$0xff]
        %v1092 = vld [vmem:[%s7 + $0x38] sm:$0xff]
        %v1093 = vld [vmem:[%s7 + $0x40] sm:$0xff]
        %v1094 = vld [vmem:[%s7 + $0x48] sm:$0xff]
        %v1095 = vld [vmem:[%s7 + $0x50] sm:$0xff]
        %v1096 = vld [vmem:[%s7 + $0x58] sm:$0xff]
        %v1097 = vld [vmem:[%s7 + $0x60] sm:$0xff]
        %v1098 = vld [vmem:[%s7 + $0x68] sm:$0xff]
        %v1099 = vld [vmem:[%s7 + $0x70] sm:$0xff]
        %v1100 = vld [vmem:[%s7 + $0x78] sm:$0xff]
        %v1101 = vld [vmem:[%s7 + $0x80] sm:$0xff]
        %v1102 = vld [vmem:[%s7 + $0x88] sm:$0xff]
        %v1103 = vld [vmem:[%s7 + $0x90] sm:$0xff]
        %v1104 = vld [vmem:[%s7 + $0x98] sm:$0xff]
        %v1105 = vld [vmem:[%s7 + $0xa0] sm:$0xff]
        %v1106 = vld [vmem:[%s7 + $0xa8] sm:$0xff]
        %v1107 = vld [vmem:[%s7 + $0xb0] sm:$0xff]
        %v1108 = vld [vmem:[%s7 + $0xb8] sm:$0xff]
        %v1109 = vld [vmem:[%s7 + $0xc0] sm:$0xff]
        %v1110 = vld [vmem:[%s7 + $0xc8] sm:$0xff]
        %v1111 = vld [vmem:[%s7 + $0xd0] sm:$0xff]
        %v1112 = vld [vmem:[%s7 + $0xd8] sm:$0xff]
        %v1113 = vld [vmem:[%s7 + $0xe0] sm:$0xff]
        %v1114 = vld [vmem:[%s7 + $0xe8] sm:$0xff]
        %v1115 = vld [vmem:[%s7 + $0xf0] sm:$0xff]
        %v1116 = vld [vmem:[%s7 + $0xf8] sm:$0xff]
        %v1117 = vld [vmem:[%s8] sm:$0x3]
        %v1119 = vlaneseq
        %v1120 = vshrl.u32 %v1119, 7
        %v1121 = vsub.s32 0, %v1120
        %v1122 = vrot.slane %v1117, %v1121
        %v1123 = vlaneseq
        %v1124 = vshrl.u32 %v1123, 7
        %v1125 = vsub.s32 1, %v1124
        %v1126 = vrot.slane %v1117, %v1125
        %1129 = vmatprep.subr.mxu0 %v1116
        %1130 = vmatpush1.msra.mxu0 %v1115
        %1131 = vmatprep.subr.mxu0 %v1114
        %1132 = vmatpush1.msra.mxu0 %v1113
        %1133 = vmatprep.subr.mxu0 %v1112
        %1134 = vmatpush1.msra.mxu0 %v1111
        %1135 = vmatprep.subr.mxu0 %v1110
        %1136 = vmatpush1.msra.mxu0 %v1109
        %1137 = vmatprep.subr.mxu0 %v1108
        %1138 = vmatpush1.msra.mxu0 %v1107
        %1139 = vmatprep.subr.mxu0 %v1106
        %1140 = vmatpush1.msra.mxu0 %v1105
        %1141 = vmatprep.subr.mxu0 %v1104
        %1142 = vmatpush1.msra.mxu0 %v1103
        %1143 = vmatprep.subr.mxu0 %v1102
        %1144 = vmatpush1.msra.mxu0 %v1101
        %1145 = vmatprep.subr.mxu0 %v1100
        %1146 = vmatpush1.msra.mxu0 %v1099
        %1147 = vmatprep.subr.mxu0 %v1098
        %1148 = vmatpush1.msra.mxu0 %v1097
        %1149 = vmatprep.subr.mxu0 %v1096
        %1150 = vmatpush1.msra.mxu0 %v1095
        %1151 = vmatprep.subr.mxu0 %v1094
        %1152 = vmatpush1.msra.mxu0 %v1093
        %1153 = vmatprep.subr.mxu0 %v1092
        %1154 = vmatpush1.msra.mxu0 %v1091
        %1155 = vmatprep.subr.mxu0 %v1090
        %1156 = vmatpush1.msra.mxu0 %v1089
        %1157 = vmatprep.subr.mxu0 %v1088
        %1158 = vmatpush1.msra.mxu0 %v1087
        %1159 = vmatprep.subr.mxu0 %v1086
        %1160 = vmatpush1.msra.mxu0 %v1085
        %1161 = vmatprep.subr.mxu0 0.0
        %1162 = vmatpush2.msra.mxu0 0.0
        %1163 = vmatprep.subr.mxu0 0.0
        %1164 = vmatpush2.msra.mxu0 0.0
        %1165 = vmatprep.subr.mxu0 0.0
        %1166 = vmatpush2.msra.mxu0 0.0
        %1167 = vmatprep.subr.mxu0 0.0
        %1168 = vmatpush2.msra.mxu0 0.0
        %1169 = vmatprep.subr.mxu0 0.0
        %1170 = vmatpush2.msra.mxu0 0.0
        %1171 = vmatprep.subr.mxu0 0.0
        %1172 = vmatpush2.msra.mxu0 0.0
        %1173 = vmatprep.subr.mxu0 0.0
        %1174 = vmatpush2.msra.mxu0 0.0
        %1175 = vmatprep.subr.mxu0 0.0
        %1176 = vmatpush2.msra.mxu0 0.0
        %1177 = vmatprep.subr.mxu0 0.0
        %1178 = vmatpush2.msra.mxu0 0.0
        %1179 = vmatprep.subr.mxu0 0.0
        %1180 = vmatpush2.msra.mxu0 0.0
        %1181 = vmatprep.subr.mxu0 0.0
        %1182 = vmatpush2.msra.mxu0 0.0
        %1183 = vmatprep.subr.mxu0 0.0
        %1184 = vmatpush2.msra.mxu0 0.0
        %1185 = vmatprep.subr.mxu0 0.0
        %1186 = vmatpush2.msra.mxu0 0.0
        %1187 = vmatprep.subr.mxu0 0.0
        %1188 = vmatpush2.msra.mxu0 0.0
        %1189 = vmatprep.subr.mxu0 0.0
        %1190 = vmatpush2.msra.mxu0 0.0
        %1191 = vmatprep.subr.mxu0 0.0
        %1192 = vmatpush2.msra.mxu0 0.0
        %1193 = vmatprep.mubr.f32.mxu0 0.0
        %1194 = vmatmul.mubr.f32.gmra.mxu0 %v1069
        %v1195 = vpop.f32.mrf.mxu0
        %v1196 = vadd.f32 %v1122, %v1195
        %v1197 = vpop.f32.mrf.mxu0
        %v1198 = vadd.f32 %v1126, %v1197
        %1199 = vmatprep.mubr.f32.mxu0 0.0
        %1200 = vmatmul.mubr.f32.gmra.mxu0 %v1070
        %v1201 = vpop.f32.mrf.mxu0
        %v1202 = vadd.f32 %v1122, %v1201
        %v1203 = vpop.f32.mrf.mxu0
        %v1204 = vadd.f32 %v1126, %v1203
        %1205 = vmatprep.mubr.f32.mxu0 0.0
        %1206 = vmatmul.mubr.f32.gmra.mxu0 %v1071
        %v1207 = vpop.f32.mrf.mxu0
        %v1208 = vadd.f32 %v1122, %v1207
        %v1209 = vpop.f32.mrf.mxu0
        %v1210 = vadd.f32 %v1126, %v1209
        %1211 = vmatprep.mubr.f32.mxu0 0.0
        %1212 = vmatmul.mubr.f32.gmra.mxu0 %v1072
        %v1213 = vpop.f32.mrf.mxu0
        %v1214 = vadd.f32 %v1122, %v1213
        %v1215 = vpop.f32.mrf.mxu0
        %v1216 = vadd.f32 %v1126, %v1215
        %1217 = vmatprep.mubr.f32.mxu0 0.0
        %1218 = vmatmul.mubr.f32.gmra.mxu0 %v1073
        %v1219 = vpop.f32.mrf.mxu0
        %v1220 = vadd.f32 %v1122, %v1219
        %v1221 = vpop.f32.mrf.mxu0
        %v1222 = vadd.f32 %v1126, %v1221
        %1223 = vmatprep.mubr.f32.mxu0 0.0
        %1224 = vmatmul.mubr.f32.gmra.mxu0 %v1074
        %v1225 = vpop.f32.mrf.mxu0
        %v1226 = vadd.f32 %v1122, %v1225
        %v1227 = vpop.f32.mrf.mxu0
        %v1228 = vadd.f32 %v1126, %v1227
        %1229 = vmatprep.mubr.f32.mxu0 0.0
        %1230 = vmatmul.mubr.f32.gmra.mxu0 %v1075
        %v1231 = vpop.f32.mrf.mxu0
        %v1232 = vadd.f32 %v1122, %v1231
        %v1233 = vpop.f32.mrf.mxu0
        %v1234 = vadd.f32 %v1126, %v1233
        %1235 = vmatprep.mubr.f32.mxu0 0.0
        %1236 = vmatmul.mubr.f32.gmra.mxu0 %v1076
        %v1237 = vpop.f32.mrf.mxu0
        %v1238 = vadd.f32 %v1122, %v1237
        %v1239 = vpop.f32.mrf.mxu0
        %v1240 = vadd.f32 %v1126, %v1239
        %1241 = vmatprep.mubr.f32.mxu0 0.0
        %1242 = vmatmul.mubr.f32.gmra.mxu0 %v1077
        %v1243 = vpop.f32.mrf.mxu0
        %v1244 = vadd.f32 %v1122, %v1243
        %v1245 = vpop.f32.mrf.mxu0
        %v1246 = vadd.f32 %v1126, %v1245
        %1247 = vmatprep.mubr.f32.mxu0 0.0
        %1248 = vmatmul.mubr.f32.gmra.mxu0 %v1078
        %v1249 = vpop.f32.mrf.mxu0
        %v1250 = vadd.f32 %v1122, %v1249
        %v1251 = vpop.f32.mrf.mxu0
        %v1252 = vadd.f32 %v1126, %v1251
        %1253 = vmatprep.mubr.f32.mxu0 0.0
        %1254 = vmatmul.mubr.f32.gmra.mxu0 %v1079
        %v1255 = vpop.f32.mrf.mxu0
        %v1256 = vadd.f32 %v1122, %v1255
        %v1257 = vpop.f32.mrf.mxu0
        %v1258 = vadd.f32 %v1126, %v1257
        %1259 = vmatprep.mubr.f32.mxu0 0.0
        %1260 = vmatmul.mubr.f32.gmra.mxu0 %v1080
        %v1261 = vpop.f32.mrf.mxu0
        %v1262 = vadd.f32 %v1122, %v1261
        %v1263 = vpop.f32.mrf.mxu0
        %v1264 = vadd.f32 %v1126, %v1263
        %1265 = vmatprep.mubr.f32.mxu0 0.0
        %1266 = vmatmul.mubr.f32.gmra.mxu0 %v1081
        %v1267 = vpop.f32.mrf.mxu0
        %v1268 = vadd.f32 %v1122, %v1267
        %v1269 = vpop.f32.mrf.mxu0
        %v1270 = vadd.f32 %v1126, %v1269
        %1271 = vmatprep.mubr.f32.mxu0 0.0
        %1272 = vmatmul.mubr.f32.gmra.mxu0 %v1082
        %v1273 = vpop.f32.mrf.mxu0
        %v1274 = vadd.f32 %v1122, %v1273
        %v1275 = vpop.f32.mrf.mxu0
        %v1276 = vadd.f32 %v1126, %v1275
        %1277 = vmatprep.mubr.f32.mxu0 0.0
        %1278 = vmatmul.mubr.f32.gmra.mxu0 %v1083
        %v1279 = vpop.f32.mrf.mxu0
        %v1280 = vadd.f32 %v1122, %v1279
        %v1281 = vpop.f32.mrf.mxu0
        %v1282 = vadd.f32 %v1126, %v1281
        %1283 = vmatprep.mubr.f32.mxu0 0.0
        %1284 = vmatmul.mubr.f32.gmra.mxu0 %v1084
        %v1285 = vpop.f32.mrf.mxu0
        %v1286 = vadd.f32 %v1122, %v1285
        %v1287 = vpop.f32.mrf.mxu0
        %v1288 = vadd.f32 %v1126, %v1287
        %1289 = vdwg.mxu0
        %v1290 = vmax.f32 %v1196, 0.0
        %v1291 = vmax.f32 %v1198, 0.0
        %v1292 = vmax.f32 %v1202, 0.0
        %v1293 = vmax.f32 %v1204, 0.0
        %v1294 = vmax.f32 %v1208, 0.0
        %v1295 = vmax.f32 %v1210, 0.0
        %v1296 = vmax.f32 %v1214, 0.0
        %v1297 = vmax.f32 %v1216, 0.0
        %v1298 = vmax.f32 %v1220, 0.0
        %v1299 = vmax.f32 %v1222, 0.0
        %v1300 = vmax.f32 %v1226, 0.0
        %v1301 = vmax.f32 %v1228, 0.0
        %v1302 = vmax.f32 %v1232, 0.0
        %v1303 = vmax.f32 %v1234, 0.0
        %v1304 = vmax.f32 %v1238, 0.0
        %v1305 = vmax.f32 %v1240, 0.0
        %v1306 = vmax.f32 %v1244, 0.0
        %v1307 = vmax.f32 %v1246, 0.0
        %v1308 = vmax.f32 %v1250, 0.0
        %v1309 = vmax.f32 %v1252, 0.0
        %v1310 = vmax.f32 %v1256, 0.0
        %v1311 = vmax.f32 %v1258, 0.0
        %v1312 = vmax.f32 %v1262, 0.0
        %v1313 = vmax.f32 %v1264, 0.0
        %v1314 = vmax.f32 %v1268, 0.0
        %v1315 = vmax.f32 %v1270, 0.0
        %v1316 = vmax.f32 %v1274, 0.0
        %v1317 = vmax.f32 %v1276, 0.0
        %v1318 = vmax.f32 %v1280, 0.0
        %v1319 = vmax.f32 %v1282, 0.0
        %v1320 = vmax.f32 %v1286, 0.0
        %v1321 = vmax.f32 %v1288, 0.0
        %v1322 = vld [vmem:[#allocation2] sm:$0xff]
        %v1323 = vld [vmem:[#allocation2 + $0x8] sm:$0xff]
        %v1324 = vld [vmem:[#allocation2 + $0x10] sm:$0xff]
        %v1325 = vld [vmem:[#allocation2 + $0x18] sm:$0xff]
        %v1326 = vld [vmem:[#allocation2 + $0x20] sm:$0xff]
        %v1327 = vld [vmem:[#allocation2 + $0x28] sm:$0xff]
        %v1328 = vld [vmem:[#allocation2 + $0x30] sm:$0xff]
        %v1329 = vld [vmem:[#allocation2 + $0x38] sm:$0xff]
        %v1330 = vld [vmem:[#allocation2 + $0x40] sm:$0xff]
        %v1331 = vld [vmem:[#allocation2 + $0x48] sm:$0xff]
        %v1332 = vld [vmem:[#allocation2 + $0x50] sm:$0xff]
        %v1333 = vld [vmem:[#allocation2 + $0x58] sm:$0xff]
        %v1334 = vld [vmem:[#allocation2 + $0x60] sm:$0xff]
        %v1335 = vld [vmem:[#allocation2 + $0x68] sm:$0xff]
        %v1336 = vld [vmem:[#allocation2 + $0x70] sm:$0xff]
        %v1337 = vld [vmem:[#allocation2 + $0x78] sm:$0xff]
        %v1338 = vld [vmem:[#allocation2 + $0x80] sm:$0xff]
        %v1339 = vld [vmem:[#allocation2 + $0x88] sm:$0xff]
        %v1340 = vld [vmem:[#allocation2 + $0x90] sm:$0xff]
        %v1341 = vld [vmem:[#allocation2 + $0x98] sm:$0xff]
        %v1342 = vld [vmem:[#allocation2 + $0xa0] sm:$0xff]
        %v1343 = vld [vmem:[#allocation2 + $0xa8] sm:$0xff]
        %v1344 = vld [vmem:[#allocation2 + $0xb0] sm:$0xff]
        %v1345 = vld [vmem:[#allocation2 + $0xb8] sm:$0xff]
        %v1346 = vld [vmem:[#allocation2 + $0xc0] sm:$0xff]
        %v1347 = vld [vmem:[#allocation2 + $0xc8] sm:$0xff]
        %v1348 = vld [vmem:[#allocation2 + $0xd0] sm:$0xff]
        %v1349 = vld [vmem:[#allocation2 + $0xd8] sm:$0xff]
        %v1350 = vld [vmem:[#allocation2 + $0xe0] sm:$0xff]
        %v1351 = vld [vmem:[#allocation2 + $0xe8] sm:$0xff]
        %v1352 = vld [vmem:[#allocation2 + $0xf0] sm:$0xff]
        %v1353 = vld [vmem:[#allocation2 + $0xf8] sm:$0xff]
        %v1354 = vld [vmem:[#allocation2 + $0x100] sm:$0xff]
        %v1355 = vld [vmem:[#allocation2 + $0x108] sm:$0xff]
        %v1356 = vld [vmem:[#allocation2 + $0x110] sm:$0xff]
        %v1357 = vld [vmem:[#allocation2 + $0x118] sm:$0xff]
        %v1358 = vld [vmem:[#allocation2 + $0x120] sm:$0xff]
        %v1359 = vld [vmem:[#allocation2 + $0x128] sm:$0xff]
        %v1360 = vld [vmem:[#allocation2 + $0x130] sm:$0xff]
        %v1361 = vld [vmem:[#allocation2 + $0x138] sm:$0xff]
        %v1362 = vld [vmem:[#allocation2 + $0x140] sm:$0xff]
        %v1363 = vld [vmem:[#allocation2 + $0x148] sm:$0xff]
        %v1364 = vld [vmem:[#allocation2 + $0x150] sm:$0xff]
        %v1365 = vld [vmem:[#allocation2 + $0x158] sm:$0xff]
        %v1366 = vld [vmem:[#allocation2 + $0x160] sm:$0xff]
        %v1367 = vld [vmem:[#allocation2 + $0x168] sm:$0xff]
        %v1368 = vld [vmem:[#allocation2 + $0x170] sm:$0xff]
        %v1369 = vld [vmem:[#allocation2 + $0x178] sm:$0xff]
        %v1370 = vld [vmem:[#allocation2 + $0x180] sm:$0xff]
        %v1371 = vld [vmem:[#allocation2 + $0x188] sm:$0xff]
        %v1372 = vld [vmem:[#allocation2 + $0x190] sm:$0xff]
        %v1373 = vld [vmem:[#allocation2 + $0x198] sm:$0xff]
        %v1374 = vld [vmem:[#allocation2 + $0x1a0] sm:$0xff]
        %v1375 = vld [vmem:[#allocation2 + $0x1a8] sm:$0xff]
        %v1376 = vld [vmem:[#allocation2 + $0x1b0] sm:$0xff]
        %v1377 = vld [vmem:[#allocation2 + $0x1b8] sm:$0xff]
        %v1378 = vld [vmem:[#allocation2 + $0x1c0] sm:$0xff]
        %v1379 = vld [vmem:[#allocation2 + $0x1c8] sm:$0xff]
        %v1380 = vld [vmem:[#allocation2 + $0x1d0] sm:$0xff]
        %v1381 = vld [vmem:[#allocation2 + $0x1d8] sm:$0xff]
        %v1382 = vld [vmem:[#allocation2 + $0x1e0] sm:$0xff]
        %v1383 = vld [vmem:[#allocation2 + $0x1e8] sm:$0xff]
        %v1384 = vld [vmem:[#allocation2 + $0x1f0] sm:$0xff]
        %v1385 = vld [vmem:[#allocation2 + $0x1f8] sm:$0xff]
        %v1386 = vld [vmem:[%s10] sm:$0x3]
        %v1388 = vlaneseq
        %v1389 = vshrl.u32 %v1388, 7
        %v1390 = vsub.s32 0, %v1389
        %v1391 = vrot.slane %v1386, %v1390
        %v1392 = vlaneseq
        %v1393 = vshrl.u32 %v1392, 7
        %v1394 = vsub.s32 1, %v1393
        %v1395 = vrot.slane %v1386, %v1394
        %1398 = vmatprep.subr.mxu0 %v1353
        %1399 = vmatpush1.msra.mxu0 %v1352
        %1400 = vmatprep.subr.mxu0 %v1351
        %1401 = vmatpush1.msra.mxu0 %v1350
        %1402 = vmatprep.subr.mxu0 %v1349
        %1403 = vmatpush1.msra.mxu0 %v1348
        %1404 = vmatprep.subr.mxu0 %v1347
        %1405 = vmatpush1.msra.mxu0 %v1346
        %1406 = vmatprep.subr.mxu0 %v1345
        %1407 = vmatpush1.msra.mxu0 %v1344
        %1408 = vmatprep.subr.mxu0 %v1343
        %1409 = vmatpush1.msra.mxu0 %v1342
        %1410 = vmatprep.subr.mxu0 %v1341
        %1411 = vmatpush1.msra.mxu0 %v1340
        %1412 = vmatprep.subr.mxu0 %v1339
        %1413 = vmatpush1.msra.mxu0 %v1338
        %1414 = vmatprep.subr.mxu0 %v1337
        %1415 = vmatpush1.msra.mxu0 %v1336
        %1416 = vmatprep.subr.mxu0 %v1335
        %1417 = vmatpush1.msra.mxu0 %v1334
        %1418 = vmatprep.subr.mxu0 %v1333
        %1419 = vmatpush1.msra.mxu0 %v1332
        %1420 = vmatprep.subr.mxu0 %v1331
        %1421 = vmatpush1.msra.mxu0 %v1330
        %1422 = vmatprep.subr.mxu0 %v1329
        %1423 = vmatpush1.msra.mxu0 %v1328
        %1424 = vmatprep.subr.mxu0 %v1327
        %1425 = vmatpush1.msra.mxu0 %v1326
        %1426 = vmatprep.subr.mxu0 %v1325
        %1427 = vmatpush1.msra.mxu0 %v1324
        %1428 = vmatprep.subr.mxu0 %v1323
        %1429 = vmatpush1.msra.mxu0 %v1322
        %1430 = vmatprep.subr.mxu0 %v1385
        %1431 = vmatpush2.msra.mxu0 %v1384
        %1432 = vmatprep.subr.mxu0 %v1383
        %1433 = vmatpush2.msra.mxu0 %v1382
        %1434 = vmatprep.subr.mxu0 %v1381
        %1435 = vmatpush2.msra.mxu0 %v1380
        %1436 = vmatprep.subr.mxu0 %v1379
        %1437 = vmatpush2.msra.mxu0 %v1378
        %1438 = vmatprep.subr.mxu0 %v1377
        %1439 = vmatpush2.msra.mxu0 %v1376
        %1440 = vmatprep.subr.mxu0 %v1375
        %1441 = vmatpush2.msra.mxu0 %v1374
        %1442 = vmatprep.subr.mxu0 %v1373
        %1443 = vmatpush2.msra.mxu0 %v1372
        %1444 = vmatprep.subr.mxu0 %v1371
        %1445 = vmatpush2.msra.mxu0 %v1370
        %1446 = vmatprep.subr.mxu0 %v1369
        %1447 = vmatpush2.msra.mxu0 %v1368
        %1448 = vmatprep.subr.mxu0 %v1367
        %1449 = vmatpush2.msra.mxu0 %v1366
        %1450 = vmatprep.subr.mxu0 %v1365
        %1451 = vmatpush2.msra.mxu0 %v1364
        %1452 = vmatprep.subr.mxu0 %v1363
        %1453 = vmatpush2.msra.mxu0 %v1362
        %1454 = vmatprep.subr.mxu0 %v1361
        %1455 = vmatpush2.msra.mxu0 %v1360
        %1456 = vmatprep.subr.mxu0 %v1359
        %1457 = vmatpush2.msra.mxu0 %v1358
        %1458 = vmatprep.subr.mxu0 %v1357
        %1459 = vmatpush2.msra.mxu0 %v1356
        %1460 = vmatprep.subr.mxu0 %v1355
        %1461 = vmatpush2.msra.mxu0 %v1354
        %1462 = vmatprep.mubr.f32.mxu0 %v1291
        %1463 = vmatmul.mubr.f32.gmra.mxu0 %v1290
        %v1464 = vpop.f32.mrf.mxu0
        %v1465 = vadd.f32 %v1391, %v1464
        %v1466 = vpop.f32.mrf.mxu0
        %v1467 = vadd.f32 %v1395, %v1466
        %1468 = vmatprep.mubr.f32.mxu0 %v1293
        %1469 = vmatmul.mubr.f32.gmra.mxu0 %v1292
        %v1470 = vpop.f32.mrf.mxu0
        %v1471 = vadd.f32 %v1391, %v1470
        %v1472 = vpop.f32.mrf.mxu0
        %v1473 = vadd.f32 %v1395, %v1472
        %1474 = vmatprep.mubr.f32.mxu0 %v1295
        %1475 = vmatmul.mubr.f32.gmra.mxu0 %v1294
        %v1476 = vpop.f32.mrf.mxu0
        %v1477 = vadd.f32 %v1391, %v1476
        %v1478 = vpop.f32.mrf.mxu0
        %v1479 = vadd.f32 %v1395, %v1478
        %1480 = vmatprep.mubr.f32.mxu0 %v1297
        %1481 = vmatmul.mubr.f32.gmra.mxu0 %v1296
        %v1482 = vpop.f32.mrf.mxu0
        %v1483 = vadd.f32 %v1391, %v1482
        %v1484 = vpop.f32.mrf.mxu0
        %v1485 = vadd.f32 %v1395, %v1484
        %1486 = vmatprep.mubr.f32.mxu0 %v1299
        %1487 = vmatmul.mubr.f32.gmra.mxu0 %v1298
        %v1488 = vpop.f32.mrf.mxu0
        %v1489 = vadd.f32 %v1391, %v1488
        %v1490 = vpop.f32.mrf.mxu0
        %v1491 = vadd.f32 %v1395, %v1490
        %1492 = vmatprep.mubr.f32.mxu0 %v1301
        %1493 = vmatmul.mubr.f32.gmra.mxu0 %v1300
        %v1494 = vpop.f32.mrf.mxu0
        %v1495 = vadd.f32 %v1391, %v1494
        %v1496 = vpop.f32.mrf.mxu0
        %v1497 = vadd.f32 %v1395, %v1496
        %1498 = vmatprep.mubr.f32.mxu0 %v1303
        %1499 = vmatmul.mubr.f32.gmra.mxu0 %v1302
        %v1500 = vpop.f32.mrf.mxu0
        %v1501 = vadd.f32 %v1391, %v1500
        %v1502 = vpop.f32.mrf.mxu0
        %v1503 = vadd.f32 %v1395, %v1502
        %1504 = vmatprep.mubr.f32.mxu0 %v1305
        %1505 = vmatmul.mubr.f32.gmra.mxu0 %v1304
        %v1506 = vpop.f32.mrf.mxu0
        %v1507 = vadd.f32 %v1391, %v1506
        %v1508 = vpop.f32.mrf.mxu0
        %v1509 = vadd.f32 %v1395, %v1508
        %1510 = vmatprep.mubr.f32.mxu0 %v1307
        %1511 = vmatmul.mubr.f32.gmra.mxu0 %v1306
        %v1512 = vpop.f32.mrf.mxu0
        %v1513 = vadd.f32 %v1391, %v1512
        %v1514 = vpop.f32.mrf.mxu0
        %v1515 = vadd.f32 %v1395, %v1514
        %1516 = vmatprep.mubr.f32.mxu0 %v1309
        %1517 = vmatmul.mubr.f32.gmra.mxu0 %v1308
        %v1518 = vpop.f32.mrf.mxu0
        %v1519 = vadd.f32 %v1391, %v1518
        %v1520 = vpop.f32.mrf.mxu0
        %v1521 = vadd.f32 %v1395, %v1520
        %1522 = vmatprep.mubr.f32.mxu0 %v1311
        %1523 = vmatmul.mubr.f32.gmra.mxu0 %v1310
        %v1524 = vpop.f32.mrf.mxu0
        %v1525 = vadd.f32 %v1391, %v1524
        %v1526 = vpop.f32.mrf.mxu0
        %v1527 = vadd.f32 %v1395, %v1526
        %1528 = vmatprep.mubr.f32.mxu0 %v1313
        %1529 = vmatmul.mubr.f32.gmra.mxu0 %v1312
        %v1530 = vpop.f32.mrf.mxu0
        %v1531 = vadd.f32 %v1391, %v1530
        %v1532 = vpop.f32.mrf.mxu0
        %v1533 = vadd.f32 %v1395, %v1532
        %1534 = vmatprep.mubr.f32.mxu0 %v1315
        %1535 = vmatmul.mubr.f32.gmra.mxu0 %v1314
        %v1536 = vpop.f32.mrf.mxu0
        %v1537 = vadd.f32 %v1391, %v1536
        %v1538 = vpop.f32.mrf.mxu0
        %v1539 = vadd.f32 %v1395, %v1538
        %1540 = vmatprep.mubr.f32.mxu0 %v1317
        %1541 = vmatmul.mubr.f32.gmra.mxu0 %v1316
        %v1542 = vpop.f32.mrf.mxu0
        %v1543 = vadd.f32 %v1391, %v1542
        %v1544 = vpop.f32.mrf.mxu0
        %v1545 = vadd.f32 %v1395, %v1544
        %1546 = vmatprep.mubr.f32.mxu0 %v1319
        %1547 = vmatmul.mubr.f32.gmra.mxu0 %v1318
        %v1548 = vpop.f32.mrf.mxu0
        %v1549 = vadd.f32 %v1391, %v1548
        %v1550 = vpop.f32.mrf.mxu0
        %v1551 = vadd.f32 %v1395, %v1550
        %1552 = vmatprep.mubr.f32.mxu0 %v1321
        %1553 = vmatmul.mubr.f32.gmra.mxu0 %v1320
        %v1554 = vpop.f32.mrf.mxu0
        %v1555 = vadd.f32 %v1391, %v1554
        %v1556 = vpop.f32.mrf.mxu0
        %v1557 = vadd.f32 %v1395, %v1556
        %1558 = vdwg.mxu0
        %v1559 = vmax.f32 %v1465, %v1467
        %1560 = vmax.xlane.f32.xlu0 %v1559
        %v1561 = vpop.xlane.xlu0 %1560
        %v1562 = vmax.f32 %v1471, %v1473
        %1563 = vmax.xlane.f32.xlu0 %v1562
        %v1564 = vpop.xlane.xlu0 %1563
        %v1565 = vmax.f32 %v1477, %v1479
        %1566 = vmax.xlane.f32.xlu0 %v1565
        %v1567 = vpop.xlane.xlu0 %1566
        %v1568 = vmax.f32 %v1483, %v1485
        %1569 = vmax.xlane.f32.xlu0 %v1568
        %v1570 = vpop.xlane.xlu0 %1569
        %v1571 = vmax.f32 %v1489, %v1491
        %1572 = vmax.xlane.f32.xlu0 %v1571
        %v1573 = vpop.xlane.xlu0 %1572
        %v1574 = vmax.f32 %v1495, %v1497
        %1575 = vmax.xlane.f32.xlu0 %v1574
        %v1576 = vpop.xlane.xlu0 %1575
        %v1577 = vmax.f32 %v1501, %v1503
        %1578 = vmax.xlane.f32.xlu0 %v1577
        %v1579 = vpop.xlane.xlu0 %1578
        %v1580 = vmax.f32 %v1507, %v1509
        %1581 = vmax.xlane.f32.xlu0 %v1580
        %v1582 = vpop.xlane.xlu0 %1581
        %v1583 = vmax.f32 %v1513, %v1515
        %1584 = vmax.xlane.f32.xlu0 %v1583
        %v1585 = vpop.xlane.xlu0 %1584
        %v1586 = vmax.f32 %v1519, %v1521
        %1587 = vmax.xlane.f32.xlu0 %v1586
        %v1588 = vpop.xlane.xlu0 %1587
        %v1589 = vmax.f32 %v1525, %v1527
        %1590 = vmax.xlane.f32.xlu0 %v1589
        %v1591 = vpop.xlane.xlu0 %1590
        %v1592 = vmax.f32 %v1531, %v1533
        %1593 = vmax.xlane.f32.xlu0 %v1592
        %v1594 = vpop.xlane.xlu0 %1593
        %v1595 = vmax.f32 %v1537, %v1539
        %1596 = vmax.xlane.f32.xlu0 %v1595
        %v1597 = vpop.xlane.xlu0 %1596
        %v1598 = vmax.f32 %v1543, %v1545
        %1599 = vmax.xlane.f32.xlu0 %v1598
        %v1600 = vpop.xlane.xlu0 %1599
        %v1601 = vmax.f32 %v1549, %v1551
        %1602 = vmax.xlane.f32.xlu0 %v1601
        %v1603 = vpop.xlane.xlu0 %1602
        %v1604 = vmax.f32 %v1555, %v1557
        %1605 = vmax.xlane.f32.xlu0 %v1604
        %v1606 = vpop.xlane.xlu0 %1605
        %v1607 = vsub.f32 %v1465, %v1561
        %v1608 = vsub.f32 %v1467, %v1561
        %v1609 = vsub.f32 %v1471, %v1564
        %v1610 = vsub.f32 %v1473, %v1564
        %v1611 = vsub.f32 %v1477, %v1567
        %v1612 = vsub.f32 %v1479, %v1567
        %v1613 = vsub.f32 %v1483, %v1570
        %v1614 = vsub.f32 %v1485, %v1570
        %v1615 = vsub.f32 %v1489, %v1573
        %v1616 = vsub.f32 %v1491, %v1573
        %v1617 = vsub.f32 %v1495, %v1576
        %v1618 = vsub.f32 %v1497, %v1576
        %v1619 = vsub.f32 %v1501, %v1579
        %v1620 = vsub.f32 %v1503, %v1579
        %v1621 = vsub.f32 %v1507, %v1582
        %v1622 = vsub.f32 %v1509, %v1582
        %v1623 = vsub.f32 %v1513, %v1585
        %v1624 = vsub.f32 %v1515, %v1585
        %v1625 = vsub.f32 %v1519, %v1588
        %v1626 = vsub.f32 %v1521, %v1588
        %v1627 = vsub.f32 %v1525, %v1591
        %v1628 = vsub.f32 %v1527, %v1591
        %v1629 = vsub.f32 %v1531, %v1594
        %v1630 = vsub.f32 %v1533, %v1594
        %v1631 = vsub.f32 %v1537, %v1597
        %v1632 = vsub.f32 %v1539, %v1597
        %v1633 = vsub.f32 %v1543, %v1600
        %v1634 = vsub.f32 %v1545, %v1600
        %v1635 = vsub.f32 %v1549, %v1603
        %v1636 = vsub.f32 %v1551, %v1603
        %v1637 = vsub.f32 %v1555, %v1606
        %v1638 = vsub.f32 %v1557, %v1606
        %v1639 = vmul.f32 %v1607, 1.442695
        %v1640 = vpow.pop %v1639
        %v1641 = vmul.f32 %v1608, 1.442695
        %v1642 = vpow.pop %v1641
        %v1643 = vmul.f32 %v1609, 1.442695
        %v1644 = vpow.pop %v1643
        %v1645 = vmul.f32 %v1610, 1.442695
        %v1646 = vpow.pop %v1645
        %v1647 = vmul.f32 %v1611, 1.442695
        %v1648 = vpow.pop %v1647
        %v1649 = vmul.f32 %v1612, 1.442695
        %v1650 = vpow.pop %v1649
        %v1651 = vmul.f32 %v1613, 1.442695
        %v1652 = vpow.pop %v1651
        %v1653 = vmul.f32 %v1614, 1.442695
        %v1654 = vpow.pop %v1653
        %v1655 = vmul.f32 %v1615, 1.442695
        %v1656 = vpow.pop %v1655
        %v1657 = vmul.f32 %v1616, 1.442695
        %v1658 = vpow.pop %v1657
        %v1659 = vmul.f32 %v1617, 1.442695
        %v1660 = vpow.pop %v1659
        %v1661 = vmul.f32 %v1618, 1.442695
        %v1662 = vpow.pop %v1661
        %v1663 = vmul.f32 %v1619, 1.442695
        %v1664 = vpow.pop %v1663
        %v1665 = vmul.f32 %v1620, 1.442695
        %v1666 = vpow.pop %v1665
        %v1667 = vmul.f32 %v1621, 1.442695
        %v1668 = vpow.pop %v1667
        %v1669 = vmul.f32 %v1622, 1.442695
        %v1670 = vpow.pop %v1669
        %v1671 = vmul.f32 %v1623, 1.442695
        %v1672 = vpow.pop %v1671
        %v1673 = vmul.f32 %v1624, 1.442695
        %v1674 = vpow.pop %v1673
        %v1675 = vmul.f32 %v1625, 1.442695
        %v1676 = vpow.pop %v1675
        %v1677 = vmul.f32 %v1626, 1.442695
        %v1678 = vpow.pop %v1677
        %v1679 = vmul.f32 %v1627, 1.442695
        %v1680 = vpow.pop %v1679
        %v1681 = vmul.f32 %v1628, 1.442695
        %v1682 = vpow.pop %v1681
        %v1683 = vmul.f32 %v1629, 1.442695
        %v1684 = vpow.pop %v1683
        %v1685 = vmul.f32 %v1630, 1.442695
        %v1686 = vpow.pop %v1685
        %v1687 = vmul.f32 %v1631, 1.442695
        %v1688 = vpow.pop %v1687
        %v1689 = vmul.f32 %v1632, 1.442695
        %v1690 = vpow.pop %v1689
        %v1691 = vmul.f32 %v1633, 1.442695
        %v1692 = vpow.pop %v1691
        %v1693 = vmul.f32 %v1634, 1.442695
        %v1694 = vpow.pop %v1693
        %v1695 = vmul.f32 %v1635, 1.442695
        %v1696 = vpow.pop %v1695
        %v1697 = vmul.f32 %v1636, 1.442695
        %v1698 = vpow.pop %v1697
        %v1699 = vmul.f32 %v1637, 1.442695
        %v1700 = vpow.pop %v1699
        %v1701 = vmul.f32 %v1638, 1.442695
        %v1702 = vpow.pop %v1701
        %v1703 = vadd.f32 %v1640, %v1642
        %1704 = vadd.xlane.f32.xlu0 %v1703
        %v1705 = vpop.xlane.xlu0 %1704
        %v1706 = vadd.f32 %v1644, %v1646
        %1707 = vadd.xlane.f32.xlu0 %v1706
        %v1708 = vpop.xlane.xlu0 %1707
        %v1709 = vadd.f32 %v1648, %v1650
        %1710 = vadd.xlane.f32.xlu0 %v1709
        %v1711 = vpop.xlane.xlu0 %1710
        %v1712 = vadd.f32 %v1652, %v1654
        %1713 = vadd.xlane.f32.xlu0 %v1712
        %v1714 = vpop.xlane.xlu0 %1713
        %v1715 = vadd.f32 %v1656, %v1658
        %1716 = vadd.xlane.f32.xlu0 %v1715
        %v1717 = vpop.xlane.xlu0 %1716
        %v1718 = vadd.f32 %v1660, %v1662
        %1719 = vadd.xlane.f32.xlu0 %v1718
        %v1720 = vpop.xlane.xlu0 %1719
        %v1721 = vadd.f32 %v1664, %v1666
        %1722 = vadd.xlane.f32.xlu0 %v1721
        %v1723 = vpop.xlane.xlu0 %1722
        %v1724 = vadd.f32 %v1668, %v1670
        %1725 = vadd.xlane.f32.xlu0 %v1724
        %v1726 = vpop.xlane.xlu0 %1725
        %v1727 = vadd.f32 %v1672, %v1674
        %1728 = vadd.xlane.f32.xlu0 %v1727
        %v1729 = vpop.xlane.xlu0 %1728
        %v1730 = vadd.f32 %v1676, %v1678
        %1731 = vadd.xlane.f32.xlu0 %v1730
        %v1732 = vpop.xlane.xlu0 %1731
        %v1733 = vadd.f32 %v1680, %v1682
        %1734 = vadd.xlane.f32.xlu0 %v1733
        %v1735 = vpop.xlane.xlu0 %1734
        %v1736 = vadd.f32 %v1684, %v1686
        %1737 = vadd.xlane.f32.xlu0 %v1736
        %v1738 = vpop.xlane.xlu0 %1737
        %v1739 = vadd.f32 %v1688, %v1690
        %1740 = vadd.xlane.f32.xlu0 %v1739
        %v1741 = vpop.xlane.xlu0 %1740
        %v1742 = vadd.f32 %v1692, %v1694
        %1743 = vadd.xlane.f32.xlu0 %v1742
        %v1744 = vpop.xlane.xlu0 %1743
        %v1745 = vadd.f32 %v1696, %v1698
        %1746 = vadd.xlane.f32.xlu0 %v1745
        %v1747 = vpop.xlane.xlu0 %1746
        %v1748 = vadd.f32 %v1700, %v1702
        %1749 = vadd.xlane.f32.xlu0 %v1748
        %v1750 = vpop.xlane.xlu0 %1749
        %v1751 = vlog2.pop %v1705
        %v1752 = vmul.f32 %v1751, 0.6931472
        %v1753 = vlog2.pop %v1708
        %v1754 = vmul.f32 %v1753, 0.6931472
        %v1755 = vlog2.pop %v1711
        %v1756 = vmul.f32 %v1755, 0.6931472
        %v1757 = vlog2.pop %v1714
        %v1758 = vmul.f32 %v1757, 0.6931472
        %v1759 = vlog2.pop %v1717
        %v1760 = vmul.f32 %v1759, 0.6931472
        %v1761 = vlog2.pop %v1720
        %v1762 = vmul.f32 %v1761, 0.6931472
        %v1763 = vlog2.pop %v1723
        %v1764 = vmul.f32 %v1763, 0.6931472
        %v1765 = vlog2.pop %v1726
        %v1766 = vmul.f32 %v1765, 0.6931472
        %v1767 = vlog2.pop %v1729
        %v1768 = vmul.f32 %v1767, 0.6931472
        %v1769 = vlog2.pop %v1732
        %v1770 = vmul.f32 %v1769, 0.6931472
        %v1771 = vlog2.pop %v1735
        %v1772 = vmul.f32 %v1771, 0.6931472
        %v1773 = vlog2.pop %v1738
        %v1774 = vmul.f32 %v1773, 0.6931472
        %v1775 = vlog2.pop %v1741
        %v1776 = vmul.f32 %v1775, 0.6931472
        %v1777 = vlog2.pop %v1744
        %v1778 = vmul.f32 %v1777, 0.6931472
        %v1779 = vlog2.pop %v1747
        %v1780 = vmul.f32 %v1779, 0.6931472
        %v1781 = vlog2.pop %v1750
        %v1782 = vmul.f32 %v1781, 0.6931472
        %v1783 = vsub.f32 %v1607, %v1752
        %v1784 = vsub.f32 %v1608, %v1752
        %v1785 = vsub.f32 %v1609, %v1754
        %v1786 = vsub.f32 %v1610, %v1754
        %v1787 = vsub.f32 %v1611, %v1756
        %v1788 = vsub.f32 %v1612, %v1756
        %v1789 = vsub.f32 %v1613, %v1758
        %v1790 = vsub.f32 %v1614, %v1758
        %v1791 = vsub.f32 %v1615, %v1760
        %v1792 = vsub.f32 %v1616, %v1760
        %v1793 = vsub.f32 %v1617, %v1762
        %v1794 = vsub.f32 %v1618, %v1762
        %v1795 = vsub.f32 %v1619, %v1764
        %v1796 = vsub.f32 %v1620, %v1764
        %v1797 = vsub.f32 %v1621, %v1766
        %v1798 = vsub.f32 %v1622, %v1766
        %v1799 = vsub.f32 %v1623, %v1768
        %v1800 = vsub.f32 %v1624, %v1768
        %v1801 = vsub.f32 %v1625, %v1770
        %v1802 = vsub.f32 %v1626, %v1770
        %v1803 = vsub.f32 %v1627, %v1772
        %v1804 = vsub.f32 %v1628, %v1772
        %v1805 = vsub.f32 %v1629, %v1774
        %v1806 = vsub.f32 %v1630, %v1774
        %v1807 = vsub.f32 %v1631, %v1776
        %v1808 = vsub.f32 %v1632, %v1776
        %v1809 = vsub.f32 %v1633, %v1778
        %v1810 = vsub.f32 %v1634, %v1778
        %v1811 = vsub.f32 %v1635, %v1780
        %v1812 = vsub.f32 %v1636, %v1780
        %v1813 = vsub.f32 %v1637, %v1782
        %v1814 = vsub.f32 %v1638, %v1782
        %1815 = vst [vmem:[%s395] sm:$0xff] %v1783
        %1816 = vst [vmem:[%s395 + $0x8] sm:$0xff] %v1784
        %1817 = vst [vmem:[%s395 + $0x10] sm:$0xff] %v1785
        %1818 = vst [vmem:[%s395 + $0x18] sm:$0xff] %v1786
        %1819 = vst [vmem:[%s395 + $0x20] sm:$0xff] %v1787
        %1820 = vst [vmem:[%s395 + $0x28] sm:$0xff] %v1788
        %1821 = vst [vmem:[%s395 + $0x30] sm:$0xff] %v1789
        %1822 = vst [vmem:[%s395 + $0x38] sm:$0xff] %v1790
        %1823 = vst [vmem:[%s395 + $0x40] sm:$0xff] %v1791
        %1824 = vst [vmem:[%s395 + $0x48] sm:$0xff] %v1792
        %1825 = vst [vmem:[%s395 + $0x50] sm:$0xff] %v1793
        %1826 = vst [vmem:[%s395 + $0x58] sm:$0xff] %v1794
        %1827 = vst [vmem:[%s395 + $0x60] sm:$0xff] %v1795
        %1828 = vst [vmem:[%s395 + $0x68] sm:$0xff] %v1796
        %1829 = vst [vmem:[%s395 + $0x70] sm:$0xff] %v1797
        %1830 = vst [vmem:[%s395 + $0x78] sm:$0xff] %v1798
        %1831 = vst [vmem:[%s395 + $0x80] sm:$0xff] %v1799
        %1832 = vst [vmem:[%s395 + $0x88] sm:$0xff] %v1800
        %1833 = vst [vmem:[%s395 + $0x90] sm:$0xff] %v1801
        %1834 = vst [vmem:[%s395 + $0x98] sm:$0xff] %v1802
        %1835 = vst [vmem:[%s395 + $0xa0] sm:$0xff] %v1803
        %1836 = vst [vmem:[%s395 + $0xa8] sm:$0xff] %v1804
        %1837 = vst [vmem:[%s395 + $0xb0] sm:$0xff] %v1805
        %1838 = vst [vmem:[%s395 + $0xb8] sm:$0xff] %v1806
        %1839 = vst [vmem:[%s395 + $0xc0] sm:$0xff] %v1807
        %1840 = vst [vmem:[%s395 + $0xc8] sm:$0xff] %v1808
        %1841 = vst [vmem:[%s395 + $0xd0] sm:$0xff] %v1809
        %1842 = vst [vmem:[%s395 + $0xd8] sm:$0xff] %v1810
        %1843 = vst [vmem:[%s395 + $0xe0] sm:$0xff] %v1811
        %1844 = vst [vmem:[%s395 + $0xe8] sm:$0xff] %v1812
        %1845 = vst [vmem:[%s395 + $0xf0] sm:$0xff] %v1813
        %1846 = vst [vmem:[%s395 + $0xf8] sm:$0xff] %v1814
        %s1847 = sand.u32 %s270, 1
        %s1848 = scalar_lea.sflag [#allocation4], %s1847
        %s1849 = sand.u32 %s270, 1
        %s1850 = smul.addr %s1849, 256
        %s1851 = scalar_lea.vmem [#allocation5], %s1850
        // Predicated region
        $region69: #{tpu_custom_call.1} parent=63 // pred_check
          %p1852 = pneg %p280
        $region70: #{tpu_custom_call.1} parent=63 // pred_check_branch
          %1854 = sbr.rel (%p1852) target = $region72
        $region71: #{tpu_custom_call.1} parent=63 // pred_region
          %s1855 = smul.u32 16, %s26
          %s1857 = ssub.s32 4096, 4096
          %1858 = vsyncadd %s1848, %s1857
          %s1859 = smul.addr %s1855, 2
          %s1860 = smul.addr %s1859, 128
          %s1861 = scalar_lea.hbm %s11, %s1860
          %s1862 = sshll.u32 %s1851, 4
          %s1863 = int_to_ptr.vmem [resolvable:$true] %s1862
          %1868 = dma.vmem_to_hbm [thread:$0]  %s1863, 4096, %s1861, %s1848, 256, 256, 16
        $region72: #{tpu_custom_call.1} parent=63 // pred_fallthru
          _
      $region64: #{tpu_custom_call.1} parent=5 // pred_fallthru
        _
      %p1869 = scmp.le.s32.totalorder 2, %s21
      // Predicated region
      $region73: #{tpu_custom_call.1} parent=5 // pred_check
        %p1870 = pneg %p1869
      $region74: #{tpu_custom_call.1} parent=5 // pred_check_branch
        %1872 = sbr.rel (%p1870) target = $region76
      $region75: #{tpu_custom_call.1} parent=5 // pred_region
        %s1873 = ssub.s32 %s21, 2
        // Predicated region
        $region77: #{tpu_custom_call.1} parent=75 // pred_check
          %p1874 = pneg %p286
        $region78: #{tpu_custom_call.1} parent=75 // pred_check_branch
          %1876 = sbr.rel (%p1874) target = $region80
        $region79: #{tpu_custom_call.1} parent=75 // pred_region
          %s1877 = sand.u32 %s271, 1
          %s1878 = scalar_lea.sflag [#allocation4], %s1877
          %s1879 = sand.u32 %s271, 1
          %s1880 = smul.addr %s1879, 256
          %s1881 = scalar_lea.vmem [#allocation5], %s1880
          %1882 = dma.done %s1878, 4096
        $region80: #{tpu_custom_call.1} parent=75 // pred_fallthru
          _
      $region76: #{tpu_custom_call.1} parent=5 // pred_fallthru
        _
    $region6: #{tpu_custom_call.1} parent=1 // loop_footer
      %s25 = sadd.s32 1, %s21
    $region7: #{tpu_custom_call.1} parent=1 // loop_footer_branch
      %20 = sbr.rel target = $region3
    $region8: #{tpu_custom_call.1} parent=1 // loop_exit
      _
    %1883 = vsyncpa [#allocation3], 1
    %s1884 = scalar_lea.sflag [#allocation3], 1
    %1885 = vsyncpa %s1884, 1
    %1886 = vsyncpa [#allocation4], 1
    %s1887 = scalar_lea.sflag [#allocation4], 1
    %1888 = vsyncpa %s1887, 1

</llo_original>
